<compile_context>
chip_gen: v7x
topology: tpu7x:2x2x1
jax: 0.10.0
libtpu: 0.0.40
codegen_flags: <defaults>
</compile_context>

<pallas_src>
import jax
import jax.numpy as jnp
from jax import lax
from jax.experimental import pallas as pl
from jax.experimental.pallas import tpu as pltpu


# ---------------------------------------------------------------------------
# Kernel
# ---------------------------------------------------------------------------
def _make_kernel(fused, nq_inner, approx_recip):
    """Build the SelfAttention kernel body.

    Grid: (batch, core_split, query_tiles_per_split).  The innermost axis is
    "arbitrary": per-(batch, split) projections are cached in VMEM scratch at
    its first iteration (qj == 0) and reused by later query tiles.  Do NOT
    reorder / parallelize the inner axis without keeping that re-projection.
    """

    def body(gamma_ref, xaug_ref, xres_ref, ak_ref, av_ref, aq_ref,
             o_ref, q_scr, k_scr, v_scr):
        qj = pl.program_id(2)
        tq = o_ref.shape[2]

        # Per-(batch, split) projections, computed once and cached in VMEM.
        @pl.when(qj == 0)
        def _():
            xb = xaug_ref[0]                                     # (Dx, HW) bf16
            k_scr[...] = lax.dot_general(
                ak_ref[...], xb, (((1,), (0,)), ((), ())),
                preferred_element_type=jnp.float32).astype(jnp.bfloat16)
            v_scr[...] = lax.dot_general(
                av_ref[...], xb, (((1,), (0,)), ((), ())),
                preferred_element_type=jnp.float32).astype(jnp.bfloat16)
            if not fused:
                q_scr[...] = lax.dot_general(
                    aq_ref[...], xb, (((1,), (0,)), ((), ())),
                    preferred_element_type=jnp.float32).astype(jnp.bfloat16)

        qg = pl.program_id(1) * nq_inner + qj                    # global query tile
        start = pl.multiple_of(qg * tq, tq)
        if fused:
            q_tile = xaug_ref[0, :, pl.ds(start, tq)]            # (C+1, Tq) bf16
        else:
            q_tile = q_scr[:, pl.ds(start, tq)]                  # (Ch, Tq) bf16

        # Transposed energy: keys on sublanes, queries on lanes, so the softmax
        # statistics come out as (1, Tq) rows already aligned with the output.
        e_t = lax.dot_general(k_scr[...], q_tile, (((0,), (0,)), ((), ())),
                              preferred_element_type=jnp.float32)   # (HW, Tq)
        m = jnp.max(e_t, axis=0, keepdims=True)                     # (1, Tq)
        p = jnp.exp(e_t - m)                                        # (HW, Tq) f32
        denom = jnp.sum(p, axis=0, keepdims=True)                   # (1, Tq)

        # Unnormalized PV matmul, then a single (1, Tq) reciprocal scaling.
        out_u = lax.dot_general(v_scr[...], p.astype(jnp.bfloat16),
                                (((1,), (0,)), ((), ())),
                                preferred_element_type=jnp.float32)  # (C, Tq)
        if approx_recip:
            inv = pl.reciprocal(denom, approx=True)
        else:
            inv = 1.0 / denom
        o_ref[0] = gamma_ref[0] * (out_u * inv) + xres_ref[0]

    if fused:
        def kernel(gamma_ref, xaug_ref, xres_ref, ak_ref, av_ref,
                   o_ref, k_scr, v_scr):
            body(gamma_ref, xaug_ref, xres_ref, ak_ref, av_ref, None,
                 o_ref, None, k_scr, v_scr)
    else:
        def kernel(gamma_ref, xaug_ref, xres_ref, aq_ref, ak_ref, av_ref,
                   o_ref, q_scr, k_scr, v_scr):
            body(gamma_ref, xaug_ref, xres_ref, ak_ref, av_ref, aq_ref,
                 o_ref, q_scr, k_scr, v_scr)
    return kernel


# ---------------------------------------------------------------------------
# Helpers
# ---------------------------------------------------------------------------
def _pick_query_tile(hw, tq):
    """Query tile: a multiple of 128 that divides HW, or the full extent."""
    if hw % 128 != 0 or hw <= tq:
        return hw
    tq = max((min(tq, hw) // 128) * 128, 128)
    while hw % tq:
        tq -= 128
    return tq


def _round_up(v, m):
    return -(-v // m) * m


def _vmem_cap_bytes():
    try:
        cap = getattr(pltpu.get_tpu_info(), "vmem_capacity_bytes", None)
        if cap:
            return int(cap)
    except Exception:
        pass
    return 64 * 1024 * 1024          # conservative (v7x-sized) fallback


def _vmem_budget_bytes(c, dx, dq, hw, tq, fused):
    """Estimate the kernel's VMEM footprint and clamp against chip capacity."""
    bf16, f32 = 2, 4
    need = 0
    need += 2 * _round_up(dx, 16) * _round_up(hw, 128) * bf16       # x_aug block (2 bufs)
    need += 2 * _round_up(c, 8) * _round_up(tq, 128) * f32          # residual tile
    need += 2 * _round_up(c, 8) * _round_up(tq, 128) * f32          # output tile
    need += 2 * 2 * _round_up(dq, 16) * _round_up(dx, 128) * bf16   # q/k weight blocks
    need += 2 * _round_up(c, 16) * _round_up(dx, 128) * bf16        # v weight block
    if not fused:
        need += _round_up(dq, 16) * _round_up(hw, 128) * bf16       # q cache scratch
    need += _round_up(dq, 16) * _round_up(hw, 128) * bf16           # k cache scratch
    need += _round_up(c, 16) * _round_up(hw, 128) * bf16            # v cache scratch
    need += 3 * _round_up(hw, 8) * _round_up(tq, 128) * f32         # energy/p live values
    cap = _vmem_cap_bytes()
    return max(min(need + 16 * 2**20, int(0.85 * cap)), 32 * 2**20)


# ---------------------------------------------------------------------------
# Wrapper
# ---------------------------------------------------------------------------
def self_attention_pallas(x_nchw, params, *, tq=256, fuse_qk=None, core_split=1,
                          approx_recip=True):
    """SAGAN SelfAttention forward.  x_nchw: (N, C, H, W) float32.

    params are conv-form weights (see init_params).  The key bias bk cancels in
    the softmax over keys, so the kernel does not use it (kept for fidelity).
    """
    n, c, h, w = x_nchw.shape
    hw = h * w
    hidden = params["wq"].shape[0]
    tq = _pick_query_tile(hw, tq)
    n_q = hw // tq
    if core_split < 1 or n_q % core_split != 0:
        core_split = 1
    nq_inner = n_q // core_split

    if fuse_qk is None:
        # Fused Wq^T Wk contraction only while it fits one MXU K pass on every
        # TPU generation; otherwise cache q/k at Ch = C//8 width instead.
        fuse_qk = c <= 128

    f32, bf16 = jnp.float32, jnp.bfloat16
    x_flat = x_nchw.reshape(n, c, hw).astype(f32)                   # residual (f32)
    # Augmented bf16 x: extra constant-ones row folds all biases into matmuls.
    x_aug = jnp.concatenate(
        [x_flat.astype(bf16), jnp.ones((n, 1, hw), bf16)], axis=1)  # (N, C+1, HW)
    dx = c + 1

    wq = params["wq"].astype(f32)
    bq = params["bq"].astype(f32)
    wk = params["wk"].astype(f32)
    wv = params["wv"].astype(f32)
    bv = params["bv"].astype(f32)
    gamma = params["gamma"].reshape(1).astype(f32)

    av = jnp.concatenate([wv, bv[:, None]], axis=1).astype(bf16)    # (C, C+1): Wv x + bv

    if fuse_qk:
        dq = dx
        m_mat = wq.T @ wk                                           # (C, C) = Wq^T Wk
        wrow = bq @ wk                                              # (C,)   = bq^T Wk
        ak = jnp.concatenate(
            [jnp.concatenate([m_mat, jnp.zeros((c, 1), f32)], axis=1),
             jnp.concatenate([wrow[None, :], jnp.zeros((1, 1), f32)], axis=1)],
            axis=0).astype(bf16)                                    # (C+1, C+1)
        weight_args = (ak, av)
    else:
        dq = hidden
        aq = jnp.concatenate([wq, bq[:, None]], axis=1).astype(bf16)            # (Ch, C+1)
        ak = jnp.concatenate([wk, jnp.zeros((hidden, 1), f32)], axis=1).astype(bf16)
        weight_args = (aq, ak, av)

    in_specs = [
        pl.BlockSpec(memory_space=pltpu.SMEM),                               # gamma
        pl.BlockSpec((1, dx, hw), lambda b, s, q: (b, 0, 0)),                # x_aug (bf16)
        pl.BlockSpec((1, c, tq), lambda b, s, q: (b, 0, s * nq_inner + q)),  # residual tile
    ]
    if not fuse_qk:
        in_specs.append(pl.BlockSpec((dq, dx), lambda b, s, q: (0, 0)))      # [Wq | bq]
    in_specs += [
        pl.BlockSpec((dq, dx), lambda b, s, q: (0, 0)),                      # key matrix
        pl.BlockSpec((c, dx), lambda b, s, q: (0, 0)),                       # [Wv | bv]
    ]

    scratch = []
    if not fuse_qk:
        scratch.append(pltpu.VMEM((dq, hw), bf16))                           # q cache
    scratch += [pltpu.VMEM((dq, hw), bf16),                                  # k cache
                pltpu.VMEM((c, hw), bf16)]                                   # v cache

    out_flat = pl.pallas_call(
        _make_kernel(fuse_qk, nq_inner, approx_recip),
        out_shape=jax.ShapeDtypeStruct((n, c, hw), f32),
        grid_spec=pltpu.PrefetchScalarGridSpec(
            num_scalar_prefetch=0,
            grid=(n, core_split, nq_inner),
            in_specs=in_specs,
            out_specs=pl.BlockSpec((1, c, tq),
                                   lambda b, s, q: (b, 0, s * nq_inner + q)),
            scratch_shapes=scratch,
        ),
        compiler_params=pltpu.CompilerParams(
            dimension_semantics=("parallel", "parallel", "arbitrary"),
            vmem_limit_bytes=_vmem_budget_bytes(c, dx, dq, hw, tq, fuse_qk),
        ),
    )(gamma, x_aug, x_flat, *weight_args)

    return out_flat.reshape(n, c, h, w)


# ---------------------------------------------------------------------------
# Params + pure-JAX reference
# ---------------------------------------------------------------------------
def init_params(key, in_channel, gamma=0.0, scale=0.1):
    """Synthetic init matching the module's parameter shapes (conv form, squeezed)."""
    hidden = max(in_channel // 8, 1)
    kq, kk, kv, kbq, kbk, kbv = jax.random.split(key, 6)
    return {
        "wq": scale * jax.random.normal(kq, (hidden, in_channel), jnp.float32),
        "bq": scale * jax.random.normal(kbq, (hidden,), jnp.float32),
        "wk": scale * jax.random.normal(kk, (hidden, in_channel), jnp.float32),
        "bk": scale * jax.random.normal(kbk, (hidden,), jnp.float32),
        "wv": scale * jax.random.normal(kv, (in_channel, in_channel), jnp.float32),
        "bv": scale * jax.random.normal(kbv, (in_channel,), jnp.float32),
        "gamma": jnp.array([gamma], jnp.float32),   # nn.Parameter(torch.as_tensor(0.0))
    }


def self_attention_ref(x_nchw, params):
    """Pure-JAX f32 reference mirroring the PyTorch forward exactly (NCHW)."""
    n, c, h, w = x_nchw.shape
    hw = h * w
    hi = lax.Precision.HIGHEST
    xf = x_nchw.astype(jnp.float32).reshape(n, c, hw)
    q = jnp.einsum("oc,ncp->nop", params["wq"], xf, precision=hi) + params["bq"][None, :, None]
    k = jnp.einsum("oc,ncp->nop", params["wk"], xf, precision=hi) + params["bk"][None, :, None]
    v = jnp.einsum("oc,ncp->nop", params["wv"], xf, precision=hi) + params["bv"][None, :, None]
    query = jnp.transpose(q, (0, 2, 1))                                     # (N, HW, Ch)
    energy = jnp.einsum("nio,noj->nij", query, k, precision=hi)             # (N, HW, HW)
    attention = jax.nn.softmax(energy, axis=-1)
    attention = jnp.transpose(attention, (0, 2, 1))                         # (N, HW, HW)
    output = jnp.einsum("ncj,nji->nci", v, attention, precision=hi)         # (N, C, HW)
    output = output.reshape(n, c, h, w)
    return params["gamma"][0] * output + x_nchw.astype(jnp.float32)


# ---------------------------------------------------------------------------
# Self-test
# ---------------------------------------------------------------------------
if __name__ == "__main__":
    key = jax.random.PRNGKey(0)

    # --- Tests 1 & 2: small C -> fused (Wq^T Wk) path, HW=256, Tq=256 ---
    N, C, H, W = 2, 32, 16, 16
    kx, kp = jax.random.split(key)
    x = jax.random.normal(kx, (N, C, H, W), jnp.float32)

    # Freshly-initialized module: gamma = 0.0 -> output must equal the input.
    params0 = init_params(kp, C, gamma=0.0)
    out0 = jax.block_until_ready(self_attention_pallas(x, params0))
    assert out0.shape == x.shape
    assert jnp.allclose(out0, x, atol=1e-6), "gamma=0 path mismatch"

    # Non-trivial gamma vs. pure-JAX f32 reference (bf16 MXU + approx reciprocal).
    params1 = init_params(kp, C, gamma=1.0)
    out1 = jax.block_until_ready(self_attention_pallas(x, params1))
    ref1 = self_attention_ref(x, params1)
    err1 = float(jnp.max(jnp.abs(out1 - ref1)))
    scale1 = float(jnp.max(jnp.abs(ref1 - x))) + 1e-6
    assert err1 <= 4e-2 * scale1, f"fused path mismatch: err={err1:.3e}, scale={scale1:.3e}"

    # --- Test 3: larger C -> unfused (Ch-wide q/k cache) path + 2-way core
    #     split of the query-tile axis (v7x megacore pattern), Tq=128 ---
    N2, C2, H2, W2 = 1, 256, 16, 16
    kx2, kp2 = jax.random.split(jax.random.PRNGKey(1))
    x2 = jax.random.normal(kx2, (N2, C2, H2, W2), jnp.float32)
    params2 = init_params(kp2, C2, gamma=0.7, scale=0.02)
    out2 = jax.block_until_ready(
        self_attention_pallas(x2, params2, tq=128, core_split=2))
    ref2 = self_attention_ref(x2, params2)
    err2 = float(jnp.max(jnp.abs(out2 - ref2)))
    scale2 = float(jnp.max(jnp.abs(ref2 - x2))) + 1e-6
    assert err2 <= 5e-2 * scale2, f"unfused path mismatch: err={err2:.3e}, scale={scale2:.3e}"

    print("KERNEL_OK")
</pallas_src>

<mosaic_0001>
module attributes {stable_mosaic.version = 11 : i64} {
  func.func @kernel(%arg0: i32, %arg1: i32, %arg2: i32, %arg3: memref<1xf32, #tpu.memory_space<smem>>, %arg4: memref<1x33x256xbf16, #tpu.memory_space<vmem>>, %arg5: memref<1x32x256xf32, #tpu.memory_space<vmem>>, %arg6: memref<33x33xbf16, #tpu.memory_space<vmem>>, %arg7: memref<32x33xbf16, #tpu.memory_space<vmem>>, %arg8: memref<1x32x256xf32, #tpu.memory_space<vmem>>, %arg9: memref<33x256xbf16, #tpu.memory_space<vmem>>, %arg10: memref<32x256xbf16, #tpu.memory_space<vmem>>) attributes {dimension_semantics = [#tpu.dimension_semantics<parallel>, #tpu.dimension_semantics<parallel>, #tpu.dimension_semantics<arbitrary>], iteration_bounds = array<i64: 2, 1, 1>, scalar_prefetch = 0 : i64, scratch_operands = 2 : i64, tpu.core_type = #tpu.core_type<tc>, window_params = [{transform_indices = @transform_0, window_bounds = array<i64: 1>}, {transform_indices = @transform_1, window_bounds = array<i64: 1, 33, 256>}, {transform_indices = @transform_2, window_bounds = array<i64: 1, 32, 256>}, {pipeline_mode = #tpu.pipeline_mode<synchronous>, transform_indices = @transform_3, window_bounds = array<i64: 33, 33>}, {pipeline_mode = #tpu.pipeline_mode<synchronous>, transform_indices = @transform_4, window_bounds = array<i64: 32, 33>}, {transform_indices = @transform_5, window_bounds = array<i64: 1, 32, 256>}]} {
    %c0_i32 = arith.constant 0 : i32
    %0 = arith.cmpi eq, %arg2, %c0_i32 : i32
    %1 = arith.extui %0 : i1 to i32
    %c0_i32_0 = arith.constant 0 : i32
    %2 = arith.cmpi ne, %1, %c0_i32_0 : i32
    scf.if %2 {
      %c0_16 = arith.constant 0 : index
      %c0_17 = arith.constant 0 : index
      %c0_18 = arith.constant 0 : index
      %34 = vector.load %arg4[%c0_16, %c0_17, %c0_18] : memref<1x33x256xbf16, #tpu.memory_space<vmem>>, vector<1x33x256xbf16>
      %35 = vector.shape_cast %34 : vector<1x33x256xbf16> to vector<33x256xbf16>
      %c0_19 = arith.constant 0 : index
      %c0_20 = arith.constant 0 : index
      %36 = vector.load %arg6[%c0_19, %c0_20] : memref<33x33xbf16, #tpu.memory_space<vmem>>, vector<33x33xbf16>
      %cst_21 = arith.constant dense<0.000000e+00> : vector<33x256xf32>
      %37 = tpu.matmul %36, %35, %cst_21 {dimension_numbers = #tpu.dot_dimension_numbers<[1], [0], [0], [1], [0, 0, 1, 1], [], []>} : vector<33x33xbf16>, vector<33x256xbf16>, vector<33x256xf32> -> vector<33x256xf32>
      %38 = arith.truncf %37 : vector<33x256xf32> to vector<33x256xbf16>
      %c0_22 = arith.constant 0 : index
      %c0_23 = arith.constant 0 : index
      %39 = vector.load %arg9[%c0_22, %c0_23] : memref<33x256xbf16, #tpu.memory_space<vmem>>, vector<33x256xbf16>
      tpu.vector_store %arg9[%c0_22, %c0_23], %38 {strides = array<i32>} : memref<33x256xbf16, #tpu.memory_space<vmem>>, vector<33x256xbf16>,
      %c0_24 = arith.constant 0 : index
      %c0_25 = arith.constant 0 : index
      %40 = vector.load %arg7[%c0_24, %c0_25] : memref<32x33xbf16, #tpu.memory_space<vmem>>, vector<32x33xbf16>
      %cst_26 = arith.constant dense<0.000000e+00> : vector<32x256xf32>
      %41 = tpu.matmul %40, %35, %cst_26 {dimension_numbers = #tpu.dot_dimension_numbers<[1], [0], [0], [1], [0, 0, 1, 1], [], []>} : vector<32x33xbf16>, vector<33x256xbf16>, vector<32x256xf32> -> vector<32x256xf32>
      %42 = arith.truncf %41 : vector<32x256xf32> to vector<32x256xbf16>
      %c0_27 = arith.constant 0 : index
      %c0_28 = arith.constant 0 : index
      %43 = vector.load %arg10[%c0_27, %c0_28] : memref<32x256xbf16, #tpu.memory_space<vmem>>, vector<32x256xbf16>
      tpu.vector_store %arg10[%c0_27, %c0_28], %42 {strides = array<i32>} : memref<32x256xbf16, #tpu.memory_space<vmem>>, vector<32x256xbf16>,
    } else {
    }
    %c1_i32 = arith.constant 1 : i32
    %3 = arith.muli %arg1, %c1_i32 : i32
    %4 = arith.addi %3, %arg2 : i32
    %c256_i32 = arith.constant 256 : i32
    %5 = arith.muli %4, %c256_i32 : i32
    %6 = tpu.assume_multiple %5, 256 : i32
    %c0 = arith.constant 0 : index
    %c0_1 = arith.constant 0 : index
    %7 = arith.index_cast %6 : i32 to index
    %8 = vector.load %arg4[%c0, %c0_1, %7] : memref<1x33x256xbf16, #tpu.memory_space<vmem>>, vector<1x33x256xbf16>
    %9 = vector.shape_cast %8 : vector<1x33x256xbf16> to vector<33x256xbf16>
    %c0_2 = arith.constant 0 : index
    %c0_3 = arith.constant 0 : index
    %10 = vector.load %arg9[%c0_2, %c0_3] : memref<33x256xbf16, #tpu.memory_space<vmem>>, vector<33x256xbf16>
    %cst = arith.constant dense<0.000000e+00> : vector<256x256xf32>
    %11 = tpu.matmul %10, %9, %cst {dimension_numbers = #tpu.dot_dimension_numbers<[0], [0], [1], [1], [0, 1, 1, 1], [], []>} : vector<33x256xbf16>, vector<33x256xbf16>, vector<256x256xf32> -> vector<256x256xf32>
    %cst_4 = arith.constant dense<0xFF800000> : vector<256xf32>
    %12 = vector.multi_reduction <maximumf>, %11, %cst_4 [0] : vector<256x256xf32> to vector<256xf32>
    %13 = vector.shape_cast %12 : vector<256xf32> to vector<1x256xf32>
    %14 = vector.broadcast %13 : vector<1x256xf32> to vector<256x256xf32>
    %15 = arith.subf %11, %14 : vector<256x256xf32>
    %16 = math.exp %15 : vector<256x256xf32>
    %cst_5 = arith.constant dense<0.000000e+00> : vector<256xf32>
    %17 = vector.multi_reduction <add>, %16, %cst_5 [0] : vector<256x256xf32> to vector<256xf32>
    %18 = vector.shape_cast %17 : vector<256xf32> to vector<1x256xf32>
    %c0_6 = arith.constant 0 : index
    %c0_7 = arith.constant 0 : index
    %19 = vector.load %arg10[%c0_6, %c0_7] : memref<32x256xbf16, #tpu.memory_space<vmem>>, vector<32x256xbf16>
    %20 = arith.truncf %16 : vector<256x256xf32> to vector<256x256xbf16>
    %cst_8 = arith.constant dense<0.000000e+00> : vector<32x256xf32>
    %21 = tpu.matmul %19, %20, %cst_8 {dimension_numbers = #tpu.dot_dimension_numbers<[1], [0], [0], [1], [0, 0, 1, 1], [], []>} : vector<32x256xbf16>, vector<256x256xbf16>, vector<32x256xf32> -> vector<32x256xf32>
    %22 = tpu.reciprocal %18 {approx = true} : vector<1x256xf32> -> vector<1x256xf32>
    %c0_9 = arith.constant 0 : index
    %23 = memref.load %arg3[%c0_9] : memref<1xf32, #tpu.memory_space<smem>>
    %24 = vector.broadcast %22 : vector<1x256xf32> to vector<32x256xf32>
    %25 = arith.mulf %21, %24 : vector<32x256xf32>
    %26 = vector.broadcast %23 : f32 to vector<32x256xf32>
    %27 = arith.mulf %26, %25 : vector<32x256xf32>
    %c0_10 = arith.constant 0 : index
    %c0_11 = arith.constant 0 : index
    %c0_12 = arith.constant 0 : index
    %28 = vector.load %arg5[%c0_10, %c0_11, %c0_12] : memref<1x32x256xf32, #tpu.memory_space<vmem>>, vector<1x32x256xf32>
    %29 = vector.shape_cast %28 : vector<1x32x256xf32> to vector<32x256xf32>
    %30 = arith.addf %27, %29 : vector<32x256xf32>
    %c0_13 = arith.constant 0 : index
    %c0_14 = arith.constant 0 : index
    %c0_15 = arith.constant 0 : index
    %31 = vector.load %arg8[%c0_13, %c0_14, %c0_15] : memref<1x32x256xf32, #tpu.memory_space<vmem>>, vector<1x32x256xf32>
    %32 = vector.shape_cast %31 : vector<1x32x256xf32> to vector<32x256xf32>
    %33 = vector.shape_cast %30 : vector<32x256xf32> to vector<1x32x256xf32>
    tpu.vector_store %arg8[%c0_13, %c0_14, %c0_15], %33 {strides = array<i32>} : memref<1x32x256xf32, #tpu.memory_space<vmem>>, vector<1x32x256xf32>,
    return
  }
  func.func @transform_0(%arg0: i32, %arg1: i32, %arg2: i32) -> i32 {
    %c0_i32 = arith.constant 0 : i32
    %c0_i32_0 = arith.constant 0 : i32
    return %c0_i32 : i32
  }
  func.func @transform_1(%arg0: i32, %arg1: i32, %arg2: i32) -> (i32, i32, i32) {
    %c0_i32 = arith.constant 0 : i32
    %c0_i32_0 = arith.constant 0 : i32
    %c0_i32_1 = arith.constant 0 : i32
    return %arg0, %c0_i32, %c0_i32_0 : i32, i32, i32
  }
  func.func @transform_2(%arg0: i32, %arg1: i32, %arg2: i32) -> (i32, i32, i32) {
    %c1_i32 = arith.constant 1 : i32
    %0 = arith.muli %arg1, %c1_i32 : i32
    %1 = arith.addi %0, %arg2 : i32
    %c0_i32 = arith.constant 0 : i32
    %c0_i32_0 = arith.constant 0 : i32
    return %arg0, %c0_i32, %1 : i32, i32, i32
  }
  func.func @transform_3(%arg0: i32, %arg1: i32, %arg2: i32) -> (i32, i32) {
    %c0_i32 = arith.constant 0 : i32
    %c0_i32_0 = arith.constant 0 : i32
    %c0_i32_1 = arith.constant 0 : i32
    return %c0_i32, %c0_i32_0 : i32, i32
  }
  func.func @transform_4(%arg0: i32, %arg1: i32, %arg2: i32) -> (i32, i32) {
    %c0_i32 = arith.constant 0 : i32
    %c0_i32_0 = arith.constant 0 : i32
    %c0_i32_1 = arith.constant 0 : i32
    return %c0_i32, %c0_i32_0 : i32, i32
  }
  func.func @transform_5(%arg0: i32, %arg1: i32, %arg2: i32) -> (i32, i32, i32) {
    %c1_i32 = arith.constant 1 : i32
    %0 = arith.muli %arg1, %c1_i32 : i32
    %1 = arith.addi %0, %arg2 : i32
    %c0_i32 = arith.constant 0 : i32
    %c0_i32_0 = arith.constant 0 : i32
    return %arg0, %c0_i32, %1 : i32, i32, i32
  }
}

</mosaic_0001>

<llo_original>
// kernel: tpu_custom_call.1
$region0: #{tpu_custom_call.1}
  #allocation0 [shape = 'u32[]', space=smem, size = 0x4, offset = 0x4, fixed_abs, tag = 'smem constant byte address 0x4 - core index']
  #allocation1 [shape = 'u32[144,128]{1,0:T(1,128)}', space=vmem, size = 0x12000, scoped, tag = 'internal scratch']
  #allocation2 [shape = 'bf16[33,256]{1,0:T(8,128)(2,1)}', space=vmem, size = 0x5000, scoped, tag = 'scratch operand']
  #allocation3 [shape = 'bf16[32,256]{1,0:T(16,128)(2,1)}', space=vmem, size = 0x4000, scoped, tag = 'scratch operand']
  #allocation4 [shape = 'f32[1]{0:T(128)S(6)}', space=smem, size = 0x200, scoped, tag = 'scoped memory for tpu_custom_call.1']
  %s0 = inlined_call_operand.<no memory space> [shape: f32[1], index: 0, kind: input, shape index: {}]
  %s1 = inlined_call_operand.vmem [shape: bf16[2,33,256], index: 1, kind: input, shape index: {}]
  %s2 = inlined_call_operand.vmem [shape: f32[2,32,256], index: 2, kind: input, shape index: {}]
  %s3 = inlined_call_operand.vmem [shape: bf16[33,33], index: 3, kind: input, shape index: {}]
  %s4 = inlined_call_operand.hbm [shape: bf16[32,33], index: 4, kind: input, shape index: {}]
  %s5 = inlined_call_operand.hbm [shape: f32[2,32,256], index: 5, kind: output, shape index: {}]
  %s6 = sld [smem:[#allocation0]]
  $region61: #{tpu_custom_call.1} parent=0
    _
  %s8 = ssub.s32 1, %s6
  %s9 = scalar_select 0, %s8, %s6
  %10 = sst [smem:[#allocation4]] %s0
  $region1: #{tpu_custom_call.1} parent=0
    #allocation5 [shape = 'u8[8192]{0}', space=vmem, size = 0x2000, scoped, tag = 'input window, operand 4, single buffered']
    #allocation6 [shape = 's32[2]{0}', space=sflag, size = 0x8, scoped, tag = 'scoped memory for tpu_custom_call.1']
    #allocation7 [shape = 's32[2]{0}', space=sflag, size = 0x8, scoped, tag = 'scoped memory for tpu_custom_call.1']
    #allocation8 [shape = 'u8[65536]{0}', space=vmem, size = 0x10000, scoped, tag = 'output window, operand 0']
    %11 = vsyncpa [#allocation6], 0
    %12 = vsyncpa [#allocation7], 0
    %s13 = scalar_lea.sflag [#allocation7], 1
    %14 = vsyncpa %s13, 0
    loop: start=0, step=1, limit=4
    $region2: #{tpu_custom_call.1} parent=1 // loop_pre_header
      _
    $region3: #{tpu_custom_call.1} parent=1 // loop_header
      %s16 = sphi 0, %s20
      %p17 = scmp.ge.s32.totalorder %s16, 4
      %s23 = sphi 0, %s42
      %s24 = sphi 0, %s38
      %s25 = sphi 0, %s34
      %s26 = sphi 0, %s23
      %s27 = sphi 0, %s24
      %s28 = sphi 0, %s25
      %s29 = sphi 0, %s26
      %s30 = sphi 0, %s27
      %s31 = sphi 0, %s28
      %s43 = sphi 0, %s43
      %s45 = sphi 0, %s43
      %s46 = sphi 0, %s45
      %s60 = sphi 0, %s46
      %s66 = sphi 0, %s68
      %s69 = sphi 0, %s66
      %s70 = sphi 0, %s69
      %s86 = sphi 0, %s70
      %s96 = sphi 0, %s98
      %s99 = sphi 0, %s96
      %s100 = sphi 0, %s99
      %s116 = sphi 0, %s100
      %s120 = sphi 0, %s120
      %s122 = sphi 0, %s120
      %s123 = sphi 0, %s122
      %s137 = sphi 0, %s123
      %s141 = sphi 0, %s141
      %s143 = sphi 0, %s141
      %s144 = sphi 0, %s143
      %s158 = sphi 0, %s144
      %s168 = sphi 0, %s170
      %s171 = sphi 0, %s168
      %s172 = sphi 0, %s171
      %s188 = sphi 0, %s172
    $region4: #{tpu_custom_call.1} parent=1 // loop_header_branch
      %19 = sbr.rel (%p17) target = $region8
    $region5: #{tpu_custom_call.1} parent=1 // loop_body
      %s21 = ssub.s32 %s16, 1
      %s22 = ssub.s32 %s16, 2
      %s32 = sadd.s32 1, %s25
      %p33 = scmp.ge.s32.totalorder %s32, 1
      %s34 = scalar_select %p33, 0, %s32
      %s35 = sadd.s32 1, %s24
      %s36 = scalar_select %p33, %s35, %s24
      %p37 = scmp.ge.s32.totalorder %s36, 1
      %s38 = scalar_select %p37, 0, %s36
      %s39 = sadd.s32 1, %s23
      %s40 = scalar_select %p37, %s39, %s23
      %p41 = scmp.ge.s32.totalorder %s40, 2
      %s42 = scalar_select %p41, 0, %s40
      %s44 = sadd.s32 %s43, 1
      %p47 = scmp.eq.s32.totalorder %s16, 1
      %p48 = scmp.ne.s32.totalorder %s43, %s45
      %p49 = scmp.eq.s32.totalorder %s16, 0
      %p50 = por %p48, %p49
      %p51 = scmp.ne.s32.totalorder %s43, %s45
      %p52 = scmp.eq.s32.totalorder %s21, 1
      %p53 = por %p51, %p52
      %p54 = scmp.ne.s32.totalorder %s45, %s46
      %p55 = scmp.eq.s32.totalorder %s21, 0
      %p56 = por %p54, %p55
      %p57 = scmp.ne.s32.totalorder %s45, %s46
      %p58 = scmp.eq.s32.totalorder %s22, 1
      %p59 = por %p57, %p58
      %p61 = scmp.ne.s32.totalorder %s46, %s60
      %p62 = scmp.eq.s32.totalorder %s22, 0
      %p63 = por %p61, %p62
      %s64 = ssub.s32 %s23, %s42
      %p65 = scmp.eq.s32.totalorder %s64, 0
      %s67 = sadd.s32 %s66, 1
      %s68 = scalar_select %p65, %s66, %s67
      %p71 = pneg %p65
      %p72 = scmp.eq.s32.totalorder %s16, 1
      %p73 = por %p71, %p72
      %p74 = scmp.ne.s32.totalorder %s66, %s69
      %p75 = scmp.eq.s32.totalorder %s16, 0
      %p76 = por %p74, %p75
      %p77 = scmp.ne.s32.totalorder %s66, %s69
      %p78 = scmp.eq.s32.totalorder %s21, 1
      %p79 = por %p77, %p78
      %p80 = scmp.ne.s32.totalorder %s69, %s70
      %p81 = scmp.eq.s32.totalorder %s21, 0
      %p82 = por %p80, %p81
      %p83 = scmp.ne.s32.totalorder %s69, %s70
      %p84 = scmp.eq.s32.totalorder %s22, 1
      %p85 = por %p83, %p84
      %p87 = scmp.ne.s32.totalorder %s70, %s86
      %p88 = scmp.eq.s32.totalorder %s22, 0
      %p89 = por %p87, %p88
      %s90 = sadd.s32 %s24, %s25
      %s91 = sadd.s32 %s38, %s34
      %s92 = ssub.s32 %s23, %s42
      %s93 = ssub.s32 %s90, %s91
      %s94 = sor.u32 %s92, %s93
      %p95 = scmp.eq.s32.totalorder %s94, 0
      %s97 = sadd.s32 %s96, 1
      %s98 = scalar_select %p95, %s96, %s97
      %p101 = pneg %p95
      %p102 = scmp.eq.s32.totalorder %s16, 1
      %p103 = por %p101, %p102
      %p104 = scmp.ne.s32.totalorder %s96, %s99
      %p105 = scmp.eq.s32.totalorder %s16, 0
      %p106 = por %p104, %p105
      %p107 = scmp.ne.s32.totalorder %s96, %s99
      %p108 = scmp.eq.s32.totalorder %s21, 1
      %p109 = por %p107, %p108
      %p110 = scmp.ne.s32.totalorder %s99, %s100
      %p111 = scmp.eq.s32.totalorder %s21, 0
      %p112 = por %p110, %p111
      %p113 = scmp.ne.s32.totalorder %s99, %s100
      %p114 = scmp.eq.s32.totalorder %s22, 1
      %p115 = por %p113, %p114
      %p117 = scmp.ne.s32.totalorder %s100, %s116
      %p118 = scmp.eq.s32.totalorder %s22, 0
      %p119 = por %p117, %p118
      %s121 = sadd.s32 %s120, 1
      %p124 = scmp.eq.s32.totalorder %s16, 1
      %p125 = scmp.ne.s32.totalorder %s120, %s122
      %p126 = scmp.eq.s32.totalorder %s16, 0
      %p127 = por %p125, %p126
      %p128 = scmp.ne.s32.totalorder %s120, %s122
      %p129 = scmp.eq.s32.totalorder %s21, 1
      %p130 = por %p128, %p129
      %p131 = scmp.ne.s32.totalorder %s122, %s123
      %p132 = scmp.eq.s32.totalorder %s21, 0
      %p133 = por %p131, %p132
      %p134 = scmp.ne.s32.totalorder %s122, %s123
      %p135 = scmp.eq.s32.totalorder %s22, 1
      %p136 = por %p134, %p135
      %p138 = scmp.ne.s32.totalorder %s123, %s137
      %p139 = scmp.eq.s32.totalorder %s22, 0
      %p140 = por %p138, %p139
      %s142 = sadd.s32 %s141, 1
      %p145 = scmp.eq.s32.totalorder %s16, 1
      %p146 = scmp.ne.s32.totalorder %s141, %s143
      %p147 = scmp.eq.s32.totalorder %s16, 0
      %p148 = por %p146, %p147
      %p149 = scmp.ne.s32.totalorder %s141, %s143
      %p150 = scmp.eq.s32.totalorder %s21, 1
      %p151 = por %p149, %p150
      %p152 = scmp.ne.s32.totalorder %s143, %s144
      %p153 = scmp.eq.s32.totalorder %s21, 0
      %p154 = por %p152, %p153
      %p155 = scmp.ne.s32.totalorder %s143, %s144
      %p156 = scmp.eq.s32.totalorder %s22, 1
      %p157 = por %p155, %p156
      %p159 = scmp.ne.s32.totalorder %s144, %s158
      %p160 = scmp.eq.s32.totalorder %s22, 0
      %p161 = por %p159, %p160
      %s162 = sadd.s32 %s24, %s25
      %s163 = sadd.s32 %s38, %s34
      %s164 = ssub.s32 %s23, %s42
      %s165 = ssub.s32 %s162, %s163
      %s166 = sor.u32 %s164, %s165
      %p167 = scmp.eq.s32.totalorder %s166, 0
      %s169 = sadd.s32 %s168, 1
      %s170 = scalar_select %p167, %s168, %s169
      %p173 = pneg %p167
      %p174 = scmp.eq.s32.totalorder %s16, 1
      %p175 = por %p173, %p174
      %p176 = scmp.ne.s32.totalorder %s168, %s171
      %p177 = scmp.eq.s32.totalorder %s16, 0
      %p178 = por %p176, %p177
      %p179 = scmp.ne.s32.totalorder %s168, %s171
      %p180 = scmp.eq.s32.totalorder %s21, 1
      %p181 = por %p179, %p180
      %p182 = scmp.ne.s32.totalorder %s171, %s172
      %p183 = scmp.eq.s32.totalorder %s21, 0
      %p184 = por %p182, %p183
      %p185 = scmp.ne.s32.totalorder %s171, %s172
      %p186 = scmp.eq.s32.totalorder %s22, 1
      %p187 = por %p185, %p186
      %p189 = scmp.ne.s32.totalorder %s172, %s188
      %p190 = scmp.eq.s32.totalorder %s22, 0
      %p191 = por %p189, %p190
      %p192 = scmp.le.s32.totalorder 1, %s16
      %p193 = scmp.lt.s32.totalorder %s16, 3
      %p194 = pnand %p192, %p193
      %p195 = pneg %p194
      // Predicated region
      $region9: #{tpu_custom_call.1} parent=5 // pred_check
        _
      $region10: #{tpu_custom_call.1} parent=5 // pred_check_branch
        %197 = sbr.rel (%p194) target = $region12
      $region11: #{tpu_custom_call.1} parent=5 // pred_region
        %s198 = ssub.s32 %s16, 1
        // Predicated region
        $region13: #{tpu_custom_call.1} parent=11 // pred_check
          %p199 = pneg %p56
        $region14: #{tpu_custom_call.1} parent=11 // pred_check_branch
          %201 = sbr.rel (%p199) target = $region16
        $region15: #{tpu_custom_call.1} parent=11 // pred_region
          _
        $region16: #{tpu_custom_call.1} parent=11 // pred_fallthru
          _
        // Predicated region
        $region17: #{tpu_custom_call.1} parent=11 // pred_check
          %p202 = pneg %p133
        $region18: #{tpu_custom_call.1} parent=11 // pred_check_branch
          %204 = sbr.rel (%p202) target = $region20
        $region19: #{tpu_custom_call.1} parent=11 // pred_region
          _
        $region20: #{tpu_custom_call.1} parent=11 // pred_fallthru
          _
        // Predicated region
        $region21: #{tpu_custom_call.1} parent=11 // pred_check
          %p205 = pneg %p154
        $region22: #{tpu_custom_call.1} parent=11 // pred_check_branch
          %207 = sbr.rel (%p205) target = $region24
        $region23: #{tpu_custom_call.1} parent=11 // pred_region
          %s209 = ssub.s32 256, 256
          %210 = vsyncadd [#allocation6], %s209
          %s211 = sshll.u32 [#allocation5], 4
          %s212 = int_to_ptr.vmem [resolvable:$true] %s211
          %217 = dma.hbm_to_vmem [thread:$0]  %s4, 256, %s212, [#allocation6], 64, 64, 4
        $region24: #{tpu_custom_call.1} parent=11 // pred_fallthru
          _
      $region12: #{tpu_custom_call.1} parent=5 // pred_fallthru
        _
      %p218 = scmp.lt.s32.totalorder %s16, 2
      // Predicated region
      $region25: #{tpu_custom_call.1} parent=5 // pred_check
        %p219 = pneg %p218
      $region26: #{tpu_custom_call.1} parent=5 // pred_check_branch
        %221 = sbr.rel (%p219) target = $region28
      $region27: #{tpu_custom_call.1} parent=5 // pred_region
        // Predicated region
        $region29: #{tpu_custom_call.1} parent=27 // pred_check
          %p222 = pneg %p76
        $region30: #{tpu_custom_call.1} parent=27 // pred_check_branch
          %224 = sbr.rel (%p222) target = $region32
        $region31: #{tpu_custom_call.1} parent=27 // pred_region
          %p225 = scmp.lt.s32.totalorder %s23, 1
          %s226 = scalar_select %p225, %s23, 1
          %s227 = smul.addr %s226, 10
          %s228 = smul.addr %s227, 4
          %s229 = scalar_lea.vmem %s1, %s228
        $region32: #{tpu_custom_call.1} parent=27 // pred_fallthru
          _
        // Predicated region
        $region33: #{tpu_custom_call.1} parent=27 // pred_check
          %p230 = pneg %p106
        $region34: #{tpu_custom_call.1} parent=27 // pred_check_branch
          %232 = sbr.rel (%p230) target = $region36
        $region35: #{tpu_custom_call.1} parent=27 // pred_region
          %s233 = sadd.s32 %s24, %s25
          %s234 = smul.u32 2, %s233
          %p235 = scmp.lt.s32.totalorder %s23, 1
          %s236 = scalar_select %p235, %s23, 1
          %p237 = scmp.lt.s32.totalorder %s234, 1
          %s238 = scalar_select %p237, %s234, 1
          %s239 = smul.addr %s236, 8
          %s240 = sadd.s32 %s238, %s239
          %s241 = smul.addr %s240, 8
          %s242 = scalar_lea.vmem %s2, %s241
          %s243 = sadd.s32 %s24, %s25
          %s244 = smul.u32 2, %s243
        $region36: #{tpu_custom_call.1} parent=27 // pred_fallthru
          _
      $region28: #{tpu_custom_call.1} parent=5 // pred_fallthru
        _
      %p245 = scmp.le.s32.totalorder 1, %s16
      %p246 = scmp.lt.s32.totalorder %s16, 3
      %p247 = pnand %p245, %p246
      %p248 = pneg %p247
      // Predicated region
      $region37: #{tpu_custom_call.1} parent=5 // pred_check
        _
      $region38: #{tpu_custom_call.1} parent=5 // pred_check_branch
        %250 = sbr.rel (%p247) target = $region40
      $region39: #{tpu_custom_call.1} parent=5 // pred_region
        %s251 = ssub.s32 %s16, 1
        // Predicated region
        $region41: #{tpu_custom_call.1} parent=39 // pred_check
          %p252 = pneg %p154
        $region42: #{tpu_custom_call.1} parent=39 // pred_check_branch
          %254 = sbr.rel (%p252) target = $region44
        $region43: #{tpu_custom_call.1} parent=39 // pred_region
          %255 = dma.done [#allocation6], 256
        $region44: #{tpu_custom_call.1} parent=39 // pred_fallthru
          _
        %p256 = pneg %p56
        %p257 = pneg %p53
        %p258 = scmp.lt.s32.totalorder %s26, 1
        %s259 = scalar_select %p258, %s26, 1
        %s260 = smul.addr %s259, 10
        %s261 = smul.addr %s260, 4
        %s262 = scalar_lea.vmem %s1, %s261
        %p263 = pneg %p82
        %p264 = pneg %p79
        %s265 = sadd.s32 %s27, %s28
        %s266 = smul.u32 2, %s265
        %p267 = scmp.lt.s32.totalorder %s26, 1
        %s268 = scalar_select %p267, %s26, 1
        %p269 = scmp.lt.s32.totalorder %s266, 1
        %s270 = scalar_select %p269, %s266, 1
        %s271 = smul.addr %s268, 8
        %s272 = sadd.s32 %s270, %s271
        %s273 = smul.addr %s272, 8
        %s274 = scalar_lea.vmem %s2, %s273
        %p275 = pneg %p112
        %p276 = pneg %p109
        %p277 = pneg %p133
        %p278 = pneg %p130
        %p279 = pneg %p154
        %p280 = pneg %p151
        %p281 = pneg %p184
        %p282 = pneg %p181
        %s283 = sand.u32 %s171, 1
        %s284 = scalar_lea.sflag [#allocation7], %s283
        %s285 = sand.u32 %s171, 1
        %s286 = smul.addr %s285, 64
        %s287 = scalar_lea.vmem [#allocation8], %s286
        %p288 = scmp.lt.s32.totalorder %s26, 1
        %s289 = scalar_select %p288, %s26, 1
        %s290 = smul.addr %s289, 10
        %s291 = smul.addr %s290, 4
        %s292 = scalar_lea.vmem %s1, %s291
        %s293 = sadd.s32 %s27, %s28
        %s294 = smul.u32 2, %s293
        %p295 = scmp.lt.s32.totalorder %s26, 1
        %s296 = scalar_select %p295, %s26, 1
        %p297 = scmp.lt.s32.totalorder %s294, 1
        %s298 = scalar_select %p297, %s294, 1
        %s299 = smul.addr %s296, 8
        %s300 = sadd.s32 %s298, %s299
        %s301 = smul.addr %s300, 8
        %s302 = scalar_lea.vmem %s2, %s301
        %s303 = sadd.s32 %s27, %s28
        %s304 = smul.u32 2, %s303
        %s305 = sadd.s32 %s27, %s28
        %s306 = smul.u32 2, %s305
        %p308 = scmp.eq.s32.totalorder %s28, 0
        // Predicated region
        $region45: #{tpu_custom_call.1} parent=39 // pred_check
          %p309 = pneg %p308
        $region46: #{tpu_custom_call.1} parent=39 // pred_check_branch
          %311 = sbr.rel (%p309) target = $region48
        $region47: #{tpu_custom_call.1} parent=39 // pred_region
          %v312 = vld [vmem:[%s292] sm:$0xff]
          %v313 = vld [vmem:[%s292 + $0x8] sm:$0xff]
          %v314 = vld [vmem:[%s292 + $0x10] sm:$0xff]
          %v315 = vld [vmem:[%s292 + $0x18] sm:$0xff]
          %v316 = vld [vmem:[%s292 + $0x20] sm:$0x11]
          %v317 = vld [vmem:[%s3] sm:$0xf]
          %v318 = vld [vmem:[%s3 + $0x4] sm:$0xf]
          %v319 = vld [vmem:[%s3 + $0x8] sm:$0xf]
          %v320 = vld [vmem:[%s3 + $0xc] sm:$0xf]
          %v321 = vld [vmem:[%s3 + $0x10] sm:$0x1]
          %v327 = vunpack.c.l.b16 %v317
          %v328 = vunpack.c.l.b16 %v318
          %v329 = vunpack.c.l.b16 %v319
          %v330 = vunpack.c.l.b16 %v320
          %v331 = vunpack.c.l.b16 %v321
          %v332 = vpack.c.b16 %v328, %v327
          %v333 = vpack.c.b16 %v330, %v329
          %v334 = vpack.c.b16 %v331, %v331
          %v340 = vunpack.c.l.b16 %v312
          %v341 = vunpack.c.h.b16 %v312
          %v342 = vunpack.c.l.b16 %v313
          %v343 = vunpack.c.h.b16 %v313
          %v344 = vunpack.c.l.b16 %v314
          %v345 = vunpack.c.h.b16 %v314
          %v346 = vunpack.c.l.b16 %v315
          %v347 = vunpack.c.h.b16 %v315
          %v348 = vunpack.c.l.b16 %v316
          %v349 = vunpack.c.h.b16 %v316
          %v350 = vpack.c.b16 %v342, %v340
          %v351 = vpack.c.b16 %v343, %v341
          %v352 = vpack.c.b16 %v346, %v344
          %v353 = vpack.c.b16 %v347, %v345
          %v354 = vpack.c.b16 %v348, %v348
          %v355 = vpack.c.b16 %v349, %v349
          %vm360 = vcmask 269312
          %v362 = vsel %vm360, %v332, 0
          %v365 = vsel %vm360, %v333, 0
          %v368 = vsel %vm360, %v334, 0
          %vm370 = vcmask 1040384
          %v371 = vsel 0, 4294967295, 65535
          %v372 = vsel %vm370, %v371, 0
          %v374 = vand.u32 %v354, %v372
          %v377 = vand.u32 %v355, %v372
          %379 = vmatprep.subr.bf16.mxu0 %v351
          %380 = vmatpush1.bf16.msra.mxu0 %v350
          %381 = vmatprep.subr.bf16.mxu0 %v353
          %382 = vmatpush1.bf16.msra.mxu0 %v352
          %383 = vmatprep.subr.bf16.mxu0 %v377
          %384 = vmatpush1.bf16.msra.mxu0 %v374
          %385 = vmatprep.subr.bf16.mxu0 0
          %386 = vmatpush1.bf16.msra.mxu0 0
          %387 = vmatprep.subr.bf16.mxu0 0
          %388 = vmatpush1.bf16.msra.mxu0 0
          %389 = vmatprep.subr.bf16.mxu0 0
          %390 = vmatpush1.bf16.msra.mxu0 0
          %391 = vmatprep.subr.bf16.mxu0 0
          %392 = vmatpush1.bf16.msra.mxu0 0
          %393 = vmatprep.subr.bf16.mxu0 0
          %394 = vmatpush1.bf16.msra.mxu0 0
          %395 = vmatprep.subr.bf16.mxu0 0
          %396 = vmatpush1.bf16.msra.mxu0 0
          %397 = vmatprep.subr.bf16.mxu0 0
          %398 = vmatpush1.bf16.msra.mxu0 0
          %399 = vmatprep.subr.bf16.mxu0 0
          %400 = vmatpush1.bf16.msra.mxu0 0
          %401 = vmatprep.subr.bf16.mxu0 0
          %402 = vmatpush1.bf16.msra.mxu0 0
          %403 = vmatprep.subr.bf16.mxu0 0
          %404 = vmatpush1.bf16.msra.mxu0 0
          %405 = vmatprep.subr.bf16.mxu0 0
          %406 = vmatpush1.bf16.msra.mxu0 0
          %407 = vmatprep.subr.bf16.mxu0 0
          %408 = vmatpush1.bf16.msra.mxu0 0
          %409 = vmatprep.subr.bf16.mxu0 0
          %410 = vmatpush1.bf16.msra.mxu0 0
          %411 = vmatprep.mubr.bf16.mxu0 0
          %412 = vmatmul.mubr.bf16.gmra.mrb[0].mxu0 %v362
          %v413 = vpop.f32.mrb[0].mxu0
          %v414 = vadd.f32 0.0, %v413
          %v415 = vpop.f32.mrb[0].mxu0
          %v416 = vadd.f32 0.0, %v415
          %v417 = vpop.f32.mrb[0].mxu0
          %v418 = vadd.f32 0.0, %v417
          %v419 = vpop.f32.mrb[0].mxu0
          %v420 = vadd.f32 0.0, %v419
          %421 = vmatprep.mubr.bf16.mxu0 0
          %422 = vmatmul.mubr.bf16.gmra.mrb[0].mxu0 %v365
          %v423 = vpop.f32.mrb[0].mxu0
          %v424 = vadd.f32 0.0, %v423
          %v425 = vpop.f32.mrb[0].mxu0
          %v426 = vadd.f32 0.0, %v425
          %v427 = vpop.f32.mrb[0].mxu0
          %v428 = vadd.f32 0.0, %v427
          %v429 = vpop.f32.mrb[0].mxu0
          %v430 = vadd.f32 0.0, %v429
          %431 = vmatprep.mubr.bf16.mxu0 0
          %432 = vmatmul.mubr.bf16.gmra.mrb[0].mxu0 %v368
          %v433 = vpop.f32.mrb[0].mxu0
          %v434 = vadd.f32 0.0, %v433
          %v435 = vpop.f32.mrb[0].mxu0
          %v436 = vadd.f32 0.0, %v435
          %v437 = vpop.f32.mrb[0].mxu0
          %v438 = vpop.f32.mrb[0].mxu0
          %439 = vdwg.mxu0
          %v440 = vpack.c.bf16 %v418, %v414
          %v441 = vpack.c.bf16 %v420, %v416
          %v442 = vpack.c.bf16 %v428, %v424
          %v443 = vpack.c.bf16 %v430, %v426
          %v444 = vpack.c.bf16 %v434, %v434
          %v445 = vpack.c.bf16 %v436, %v436
          %v452 = vunpack.c.l.b16 %v440
          %v453 = vunpack.c.l.b16 %v441
          %v454 = vunpack.c.h.b16 %v440
          %v455 = vunpack.c.h.b16 %v441
          %v456 = vunpack.c.l.b16 %v442
          %v457 = vunpack.c.l.b16 %v443
          %v458 = vunpack.c.h.b16 %v442
          %v459 = vunpack.c.h.b16 %v443
          %v460 = vunpack.c.l.b16 %v444
          %v461 = vunpack.c.l.b16 %v445
          %v462 = vpack.c.b16 %v453, %v452
          %v463 = vpack.c.b16 %v455, %v454
          %v464 = vpack.c.b16 %v457, %v456
          %v465 = vpack.c.b16 %v459, %v458
          %v466 = vpack.c.b16 %v461, %v460
          %472 = vst [vmem:[#allocation2] sm:$0xff] %v462
          %473 = vst [vmem:[#allocation2 + $0x8] sm:$0xff] %v463
          %474 = vst [vmem:[#allocation2 + $0x10] sm:$0xff] %v464
          %475 = vst [vmem:[#allocation2 + $0x18] sm:$0xff] %v465
          %vm476 = vcmask 1040384
          %vm477 = vsmask.f32 256
          %vm478 = vmand %vm476, %vm477
          %vm479 = vcmask 1044484
          %vm480 = vsmask.f32 4352
          %vm481 = vmand %vm479, %vm480
          %vm482 = vmor %vm481, %vm478
          %v483 = vld [vmem:[#allocation2 + $0x20] sm:$0x11]
          %v484 = vsel %vm482, %v466, %v483
          %485 = vst [vmem:[#allocation2 + $0x20] sm:$0x11] %v484
          %v486 = vld [vmem:[#allocation5] sm:$0xf]
          %v487 = vld [vmem:[#allocation5 + $0x4] sm:$0xf]
          %v488 = vld [vmem:[#allocation5 + $0x8] sm:$0xf]
          %v489 = vld [vmem:[#allocation5 + $0xc] sm:$0xf]
          %v494 = vunpack.c.l.b16 %v486
          %v495 = vunpack.c.l.b16 %v487
          %v496 = vunpack.c.l.b16 %v488
          %v497 = vunpack.c.l.b16 %v489
          %v498 = vpack.c.b16 %v495, %v494
          %v499 = vpack.c.b16 %v497, %v496
          %v501 = vsel %vm360, %v498, 0
          %v504 = vsel %vm360, %v499, 0
          %506 = vmatprep.subr.bf16.mxu0 %v351
          %507 = vmatpush1.bf16.msra.mxu0 %v350
          %508 = vmatprep.subr.bf16.mxu0 %v353
          %509 = vmatpush1.bf16.msra.mxu0 %v352
          %510 = vmatprep.subr.bf16.mxu0 %v377
          %511 = vmatpush1.bf16.msra.mxu0 %v374
          %512 = vmatprep.subr.bf16.mxu0 0
          %513 = vmatpush1.bf16.msra.mxu0 0
          %514 = vmatprep.subr.bf16.mxu0 0
          %515 = vmatpush1.bf16.msra.mxu0 0
          %516 = vmatprep.subr.bf16.mxu0 0
          %517 = vmatpush1.bf16.msra.mxu0 0
          %518 = vmatprep.subr.bf16.mxu0 0
          %519 = vmatpush1.bf16.msra.mxu0 0
          %520 = vmatprep.subr.bf16.mxu0 0
          %521 = vmatpush1.bf16.msra.mxu0 0
          %522 = vmatprep.subr.bf16.mxu0 0
          %523 = vmatpush1.bf16.msra.mxu0 0
          %524 = vmatprep.subr.bf16.mxu0 0
          %525 = vmatpush1.bf16.msra.mxu0 0
          %526 = vmatprep.subr.bf16.mxu0 0
          %527 = vmatpush1.bf16.msra.mxu0 0
          %528 = vmatprep.subr.bf16.mxu0 0
          %529 = vmatpush1.bf16.msra.mxu0 0
          %530 = vmatprep.subr.bf16.mxu0 0
          %531 = vmatpush1.bf16.msra.mxu0 0
          %532 = vmatprep.subr.bf16.mxu0 0
          %533 = vmatpush1.bf16.msra.mxu0 0
          %534 = vmatprep.subr.bf16.mxu0 0
          %535 = vmatpush1.bf16.msra.mxu0 0
          %536 = vmatprep.subr.bf16.mxu0 0
          %537 = vmatpush1.bf16.msra.mxu0 0
          %538 = vmatprep.mubr.bf16.mxu0 0
          %539 = vmatmul.mubr.bf16.gmra.mrb[0].mxu0 %v501
          %v540 = vpop.f32.mrb[0].mxu0
          %v541 = vadd.f32 0.0, %v540
          %v542 = vpop.f32.mrb[0].mxu0
          %v543 = vadd.f32 0.0, %v542
          %v544 = vpop.f32.mrb[0].mxu0
          %v545 = vadd.f32 0.0, %v544
          %v546 = vpop.f32.mrb[0].mxu0
          %v547 = vadd.f32 0.0, %v546
          %548 = vmatprep.mubr.bf16.mxu0 0
          %549 = vmatmul.mubr.bf16.gmra.mrb[0].mxu0 %v504
          %v550 = vpop.f32.mrb[0].mxu0
          %v551 = vadd.f32 0.0, %v550
          %v552 = vpop.f32.mrb[0].mxu0
          %v553 = vadd.f32 0.0, %v552
          %v554 = vpop.f32.mrb[0].mxu0
          %v555 = vadd.f32 0.0, %v554
          %v556 = vpop.f32.mrb[0].mxu0
          %v557 = vadd.f32 0.0, %v556
          %558 = vdwg.mxu0
          %v559 = vpack.c.bf16 %v545, %v541
          %v560 = vpack.c.bf16 %v547, %v543
          %v561 = vpack.c.bf16 %v555, %v551
          %v562 = vpack.c.bf16 %v557, %v553
          %563 = vst [vmem:[#allocation3] sm:$0xff] %v559
          %564 = vst [vmem:[#allocation3 + $0x8] sm:$0xff] %v560
          %565 = vst [vmem:[#allocation3 + $0x10] sm:$0xff] %v561
          %566 = vst [vmem:[#allocation3 + $0x18] sm:$0xff] %v562
        $region48: #{tpu_custom_call.1} parent=39 // pred_fallthru
          _
        %s567 = sadd.s32 %s27, %s28
        %s568 = smul.u32 %s567, 256
        %s569 = sshra.s32 %s568, 7
        %s570 = sand.u32 %s568, 127
        %s571 = smul.addr %s569, 4
        %s572 = scalar_lea.vmem %s292, %s571
        %v573 = vld [vmem:[%s572] sm:$0xff]
        %v574 = vld [vmem:[%s572 + $0x8] sm:$0xff]
        %v575 = vld [vmem:[%s572 + $0x10] sm:$0xff]
        %v576 = vld [vmem:[%s572 + $0x18] sm:$0xff]
        %v577 = vld [vmem:[%s572 + $0x20] sm:$0x11]
        %v578 = vld [vmem:[#allocation2] sm:$0xff]
        %v579 = vld [vmem:[#allocation2 + $0x8] sm:$0xff]
        %v580 = vld [vmem:[#allocation2 + $0x10] sm:$0xff]
        %v581 = vld [vmem:[#allocation2 + $0x18] sm:$0xff]
        %v582 = vld [vmem:[#allocation2 + $0x20] sm:$0x11]
        %v588 = vunpack.c.l.b16 %v578
        %v589 = vunpack.c.h.b16 %v578
        %v590 = vunpack.c.l.b16 %v579
        %v591 = vunpack.c.h.b16 %v579
        %v592 = vunpack.c.l.b16 %v580
        %v593 = vunpack.c.h.b16 %v580
        %v594 = vunpack.c.l.b16 %v581
        %v595 = vunpack.c.h.b16 %v581
        %v596 = vunpack.c.l.b16 %v582
        %v597 = vunpack.c.h.b16 %v582
        %v598 = vpack.c.b16 %v590, %v588
        %v599 = vpack.c.b16 %v591, %v589
        %v600 = vpack.c.b16 %v594, %v592
        %v601 = vpack.c.b16 %v595, %v593
        %v602 = vpack.c.b16 %v596, %v596
        %v603 = vpack.c.b16 %v597, %v597
        %610 = vxpose.xlu0.c.b16.start [1/8] %v598, 128
        %611 = vxpose.xlu0.c.b16.cont [2/8] %v600, 128
        %612 = vxpose.xlu0.c.b16.cont [3/8] %v602, 128
        %613 = vxpose.xlu0.c.b16.cont [4/8] 0, 128
        %614 = vxpose.xlu0.c.b16.cont [5/8] 0, 128
        %615 = vxpose.xlu0.c.b16.cont [6/8] 0, 128
        %616 = vxpose.xlu0.c.b16.cont [7/8] 0, 128
        %617 = vxpose.xlu0.c.b16.end [8/8] 0, 128
        %v618 = vpop.trf.xlu0
        %v619 = vpop.trf.xlu0
        %v620 = vpop.trf.xlu0
        %v621 = vpop.trf.xlu0
        %v622 = vpop.trf.xlu0
        %v623 = vpop.trf.xlu0
        %v624 = vpop.trf.xlu0
        %v625 = vpop.trf.xlu0
        %626 = vxpose.xlu0.c.b16.start [1/8] %v599, 128
        %627 = vxpose.xlu0.c.b16.cont [2/8] %v601, 128
        %628 = vxpose.xlu0.c.b16.cont [3/8] %v603, 128
        %629 = vxpose.xlu0.c.b16.cont [4/8] 0, 128
        %630 = vxpose.xlu0.c.b16.cont [5/8] 0, 128
        %631 = vxpose.xlu0.c.b16.cont [6/8] 0, 128
        %632 = vxpose.xlu0.c.b16.cont [7/8] 0, 128
        %633 = vxpose.xlu0.c.b16.end [8/8] 0, 128
        %v634 = vpop.trf.xlu0
        %v635 = vpop.trf.xlu0
        %v636 = vpop.trf.xlu0
        %v637 = vpop.trf.xlu0
        %v638 = vpop.trf.xlu0
        %v639 = vpop.trf.xlu0
        %v640 = vpop.trf.xlu0
        %v641 = vpop.trf.xlu0
        %v647 = vunpack.c.l.b16 %v573
        %v648 = vunpack.c.h.b16 %v573
        %v649 = vunpack.c.l.b16 %v574
        %v650 = vunpack.c.h.b16 %v574
        %v651 = vunpack.c.l.b16 %v575
        %v652 = vunpack.c.h.b16 %v575
        %v653 = vunpack.c.l.b16 %v576
        %v654 = vunpack.c.h.b16 %v576
        %v655 = vunpack.c.l.b16 %v577
        %v656 = vunpack.c.h.b16 %v577
        %v657 = vpack.c.b16 %v649, %v647
        %v658 = vpack.c.b16 %v650, %v648
        %v659 = vpack.c.b16 %v653, %v651
        %v660 = vpack.c.b16 %v654, %v652
        %v661 = vpack.c.b16 %v655, %v655
        %v662 = vpack.c.b16 %v656, %v656
        %vm667 = vcmask 269312
        %v669 = vsel %vm667, %v618, 0
        %v672 = vsel %vm667, %v619, 0
        %v675 = vsel %vm667, %v620, 0
        %v678 = vsel %vm667, %v621, 0
        %v681 = vsel %vm667, %v622, 0
        %v684 = vsel %vm667, %v623, 0
        %v687 = vsel %vm667, %v624, 0
        %v690 = vsel %vm667, %v625, 0
        %v693 = vsel %vm667, %v634, 0
        %v696 = vsel %vm667, %v635, 0
        %v699 = vsel %vm667, %v636, 0
        %v702 = vsel %vm667, %v637, 0
        %v705 = vsel %vm667, %v638, 0
        %v708 = vsel %vm667, %v639, 0
        %v711 = vsel %vm667, %v640, 0
        %v714 = vsel %vm667, %v641, 0
        %vm716 = vcmask 1040384
        %v717 = vsel 0, 4294967295, 65535
        %v718 = vsel %vm716, %v717, 0
        %v720 = vand.u32 %v661, %v718
        %v723 = vand.u32 %v662, %v718
        %725 = vmatprep.subr.bf16.mxu0 %v658
        %726 = vmatpush1.bf16.msra.mxu0 %v657
        %727 = vmatprep.subr.bf16.mxu0 %v660
        %728 = vmatpush1.bf16.msra.mxu0 %v659
        %729 = vmatprep.subr.bf16.mxu0 %v723
        %730 = vmatpush1.bf16.msra.mxu0 %v720
        %731 = vmatprep.subr.bf16.mxu0 0
        %732 = vmatpush1.bf16.msra.mxu0 0
        %733 = vmatprep.subr.bf16.mxu0 0
        %734 = vmatpush1.bf16.msra.mxu0 0
        %735 = vmatprep.subr.bf16.mxu0 0
        %736 = vmatpush1.bf16.msra.mxu0 0
        %737 = vmatprep.subr.bf16.mxu0 0
        %738 = vmatpush1.bf16.msra.mxu0 0
        %739 = vmatprep.subr.bf16.mxu0 0
        %740 = vmatpush1.bf16.msra.mxu0 0
        %741 = vmatprep.subr.bf16.mxu0 0
        %742 = vmatpush1.bf16.msra.mxu0 0
        %743 = vmatprep.subr.bf16.mxu0 0
        %744 = vmatpush1.bf16.msra.mxu0 0
        %745 = vmatprep.subr.bf16.mxu0 0
        %746 = vmatpush1.bf16.msra.mxu0 0
        %747 = vmatprep.subr.bf16.mxu0 0
        %748 = vmatpush1.bf16.msra.mxu0 0
        %749 = vmatprep.subr.bf16.mxu0 0
        %750 = vmatpush1.bf16.msra.mxu0 0
        %751 = vmatprep.subr.bf16.mxu0 0
        %752 = vmatpush1.bf16.msra.mxu0 0
        %753 = vmatprep.subr.bf16.mxu0 0
        %754 = vmatpush1.bf16.msra.mxu0 0
        %755 = vmatprep.subr.bf16.mxu0 0
        %756 = vmatpush1.bf16.msra.mxu0 0
        %757 = vmatprep.mubr.bf16.mxu0 0
        %758 = vmatmul.mubr.bf16.gmra.mrb[0].mxu0 %v669
        %v759 = vpop.f32.mrb[0].mxu0
        %v760 = vadd.f32 0.0, %v759
        %v761 = vpop.f32.mrb[0].mxu0
        %v762 = vadd.f32 0.0, %v761
        %v763 = vpop.f32.mrb[0].mxu0
        %v764 = vadd.f32 0.0, %v763
        %v765 = vpop.f32.mrb[0].mxu0
        %v766 = vadd.f32 0.0, %v765
        %767 = vmatprep.mubr.bf16.mxu0 0
        %768 = vmatmul.mubr.bf16.gmra.mrb[0].mxu0 %v672
        %v769 = vpop.f32.mrb[0].mxu0
        %v770 = vadd.f32 0.0, %v769
        %v771 = vpop.f32.mrb[0].mxu0
        %v772 = vadd.f32 0.0, %v771
        %v773 = vpop.f32.mrb[0].mxu0
        %v774 = vadd.f32 0.0, %v773
        %v775 = vpop.f32.mrb[0].mxu0
        %v776 = vadd.f32 0.0, %v775
        %777 = vmatprep.mubr.bf16.mxu0 0
        %778 = vmatmul.mubr.bf16.gmra.mrb[0].mxu0 %v675
        %v779 = vpop.f32.mrb[0].mxu0
        %v780 = vadd.f32 0.0, %v779
        %v781 = vpop.f32.mrb[0].mxu0
        %v782 = vadd.f32 0.0, %v781
        %v783 = vpop.f32.mrb[0].mxu0
        %v784 = vadd.f32 0.0, %v783
        %v785 = vpop.f32.mrb[0].mxu0
        %v786 = vadd.f32 0.0, %v785
        %787 = vmatprep.mubr.bf16.mxu0 0
        %788 = vmatmul.mubr.bf16.gmra.mrb[0].mxu0 %v678
        %v789 = vpop.f32.mrb[0].mxu0
        %v790 = vadd.f32 0.0, %v789
        %v791 = vpop.f32.mrb[0].mxu0
        %v792 = vadd.f32 0.0, %v791
        %v793 = vpop.f32.mrb[0].mxu0
        %v794 = vadd.f32 0.0, %v793
        %v795 = vpop.f32.mrb[0].mxu0
        %v796 = vadd.f32 0.0, %v795
        %797 = vmatprep.mubr.bf16.mxu0 0
        %798 = vmatmul.mubr.bf16.gmra.mrb[0].mxu0 %v681
        %v799 = vpop.f32.mrb[0].mxu0
        %v800 = vadd.f32 0.0, %v799
        %v801 = vpop.f32.mrb[0].mxu0
        %v802 = vadd.f32 0.0, %v801
        %v803 = vpop.f32.mrb[0].mxu0
        %v804 = vadd.f32 0.0, %v803
        %v805 = vpop.f32.mrb[0].mxu0
        %v806 = vadd.f32 0.0, %v805
        %807 = vmatprep.mubr.bf16.mxu0 0
        %808 = vmatmul.mubr.bf16.gmra.mrb[0].mxu0 %v684
        %v809 = vpop.f32.mrb[0].mxu0
        %v810 = vadd.f32 0.0, %v809
        %v811 = vpop.f32.mrb[0].mxu0
        %v812 = vadd.f32 0.0, %v811
        %v813 = vpop.f32.mrb[0].mxu0
        %v814 = vadd.f32 0.0, %v813
        %v815 = vpop.f32.mrb[0].mxu0
        %v816 = vadd.f32 0.0, %v815
        %817 = vmatprep.mubr.bf16.mxu0 0
        %818 = vmatmul.mubr.bf16.gmra.mrb[0].mxu0 %v687
        %v819 = vpop.f32.mrb[0].mxu0
        %v820 = vadd.f32 0.0, %v819
        %v821 = vpop.f32.mrb[0].mxu0
        %v822 = vadd.f32 0.0, %v821
        %v823 = vpop.f32.mrb[0].mxu0
        %v824 = vadd.f32 0.0, %v823
        %v825 = vpop.f32.mrb[0].mxu0
        %v826 = vadd.f32 0.0, %v825
        %827 = vmatprep.mubr.bf16.mxu0 0
        %828 = vmatmul.mubr.bf16.gmra.mrb[0].mxu0 %v690
        %v829 = vpop.f32.mrb[0].mxu0
        %v830 = vadd.f32 0.0, %v829
        %v831 = vpop.f32.mrb[0].mxu0
        %v832 = vadd.f32 0.0, %v831
        %v833 = vpop.f32.mrb[0].mxu0
        %v834 = vadd.f32 0.0, %v833
        %v835 = vpop.f32.mrb[0].mxu0
        %v836 = vadd.f32 0.0, %v835
        %837 = vmatprep.mubr.bf16.mxu0 0
        %838 = vmatmul.mubr.bf16.gmra.mrb[0].mxu0 %v693
        %v839 = vpop.f32.mrb[0].mxu0
        %v840 = vadd.f32 0.0, %v839
        %v841 = vpop.f32.mrb[0].mxu0
        %v842 = vadd.f32 0.0, %v841
        %v843 = vpop.f32.mrb[0].mxu0
        %v844 = vadd.f32 0.0, %v843
        %v845 = vpop.f32.mrb[0].mxu0
        %v846 = vadd.f32 0.0, %v845
        %847 = vmatprep.mubr.bf16.mxu0 0
        %848 = vmatmul.mubr.bf16.gmra.mrb[0].mxu0 %v696
        %v849 = vpop.f32.mrb[0].mxu0
        %v850 = vadd.f32 0.0, %v849
        %v851 = vpop.f32.mrb[0].mxu0
        %v852 = vadd.f32 0.0, %v851
        %v853 = vpop.f32.mrb[0].mxu0
        %v854 = vadd.f32 0.0, %v853
        %v855 = vpop.f32.mrb[0].mxu0
        %v856 = vadd.f32 0.0, %v855
        %857 = vmatprep.mubr.bf16.mxu0 0
        %858 = vmatmul.mubr.bf16.gmra.mrb[0].mxu0 %v699
        %v859 = vpop.f32.mrb[0].mxu0
        %v860 = vadd.f32 0.0, %v859
        %v861 = vpop.f32.mrb[0].mxu0
        %v862 = vadd.f32 0.0, %v861
        %v863 = vpop.f32.mrb[0].mxu0
        %v864 = vadd.f32 0.0, %v863
        %v865 = vpop.f32.mrb[0].mxu0
        %v866 = vadd.f32 0.0, %v865
        %867 = vmatprep.mubr.bf16.mxu0 0
        %868 = vmatmul.mubr.bf16.gmra.mrb[0].mxu0 %v702
        %v869 = vpop.f32.mrb[0].mxu0
        %v870 = vadd.f32 0.0, %v869
        %v871 = vpop.f32.mrb[0].mxu0
        %v872 = vadd.f32 0.0, %v871
        %v873 = vpop.f32.mrb[0].mxu0
        %v874 = vadd.f32 0.0, %v873
        %v875 = vpop.f32.mrb[0].mxu0
        %v876 = vadd.f32 0.0, %v875
        %877 = vmatprep.mubr.bf16.mxu0 0
        %878 = vmatmul.mubr.bf16.gmra.mrb[0].mxu0 %v705
        %v879 = vpop.f32.mrb[0].mxu0
        %v880 = vadd.f32 0.0, %v879
        %v881 = vpop.f32.mrb[0].mxu0
        %v882 = vadd.f32 0.0, %v881
        %v883 = vpop.f32.mrb[0].mxu0
        %v884 = vadd.f32 0.0, %v883
        %v885 = vpop.f32.mrb[0].mxu0
        %v886 = vadd.f32 0.0, %v885
        %887 = vmatprep.mubr.bf16.mxu0 0
        %888 = vmatmul.mubr.bf16.gmra.mrb[0].mxu0 %v708
        %v889 = vpop.f32.mrb[0].mxu0
        %v890 = vadd.f32 0.0, %v889
        %v891 = vpop.f32.mrb[0].mxu0
        %v892 = vadd.f32 0.0, %v891
        %v893 = vpop.f32.mrb[0].mxu0
        %v894 = vadd.f32 0.0, %v893
        %v895 = vpop.f32.mrb[0].mxu0
        %v896 = vadd.f32 0.0, %v895
        %897 = vmatprep.mubr.bf16.mxu0 0
        %898 = vmatmul.mubr.bf16.gmra.mrb[0].mxu0 %v711
        %v899 = vpop.f32.mrb[0].mxu0
        %v900 = vadd.f32 0.0, %v899
        %v901 = vpop.f32.mrb[0].mxu0
        %v902 = vadd.f32 0.0, %v901
        %v903 = vpop.f32.mrb[0].mxu0
        %v904 = vadd.f32 0.0, %v903
        %v905 = vpop.f32.mrb[0].mxu0
        %v906 = vadd.f32 0.0, %v905
        %907 = vmatprep.mubr.bf16.mxu0 0
        %908 = vmatmul.mubr.bf16.gmra.mrb[0].mxu0 %v714
        %v909 = vpop.f32.mrb[0].mxu0
        %v910 = vadd.f32 0.0, %v909
        %v911 = vpop.f32.mrb[0].mxu0
        %v912 = vadd.f32 0.0, %v911
        %v913 = vpop.f32.mrb[0].mxu0
        %v914 = vadd.f32 0.0, %v913
        %v915 = vpop.f32.mrb[0].mxu0
        %v916 = vadd.f32 0.0, %v915
        %917 = vdwg.mxu0
        %v918 = vmax.f32 %v760, %v770
        %v919 = vmax.f32 %v764, %v774
        %v920 = vmax.f32 %v918, %v780
        %v921 = vmax.f32 %v919, %v784
        %v922 = vmax.f32 %v920, %v790
        %v923 = vmax.f32 %v921, %v794
        %v924 = vmax.f32 %v922, %v800
        %v925 = vmax.f32 %v923, %v804
        %v926 = vmax.f32 %v924, %v810
        %v927 = vmax.f32 %v925, %v814
        %v928 = vmax.f32 %v926, %v820
        %v929 = vmax.f32 %v927, %v824
        %v930 = vmax.f32 %v928, %v830
        %v931 = vmax.f32 %v929, %v834
        %v932 = vmax.f32 %v930, %v840
        %v933 = vmax.f32 %v931, %v844
        %v934 = vmax.f32 %v932, %v850
        %v935 = vmax.f32 %v933, %v854
        %v936 = vmax.f32 %v934, %v860
        %v937 = vmax.f32 %v935, %v864
        %v938 = vmax.f32 %v936, %v870
        %v939 = vmax.f32 %v937, %v874
        %v940 = vmax.f32 %v938, %v880
        %v941 = vmax.f32 %v939, %v884
        %v942 = vmax.f32 %v940, %v890
        %v943 = vmax.f32 %v941, %v894
        %v944 = vmax.f32 %v942, %v900
        %v945 = vmax.f32 %v943, %v904
        %v946 = vmax.f32 %v944, %v910
        %v947 = vmax.f32 %v945, %v914
        %v948 = vmax.f32 %v946, %v947
        %v949 = vrot.slane %v948, 4
        %v950 = vmax.f32 %v948, %v949
        %v951 = vrot.slane %v950, 2
        %v952 = vmax.f32 %v950, %v951
        %v953 = vrot.slane %v952, 1
        %v954 = vmax.f32 %v952, %v953
        %v955 = vmax.f32 %v762, %v772
        %v956 = vmax.f32 %v766, %v776
        %v957 = vmax.f32 %v955, %v782
        %v958 = vmax.f32 %v956, %v786
        %v959 = vmax.f32 %v957, %v792
        %v960 = vmax.f32 %v958, %v796
        %v961 = vmax.f32 %v959, %v802
        %v962 = vmax.f32 %v960, %v806
        %v963 = vmax.f32 %v961, %v812
        %v964 = vmax.f32 %v962, %v816
        %v965 = vmax.f32 %v963, %v822
        %v966 = vmax.f32 %v964, %v826
        %v967 = vmax.f32 %v965, %v832
        %v968 = vmax.f32 %v966, %v836
        %v969 = vmax.f32 %v967, %v842
        %v970 = vmax.f32 %v968, %v846
        %v971 = vmax.f32 %v969, %v852
        %v972 = vmax.f32 %v970, %v856
        %v973 = vmax.f32 %v971, %v862
        %v974 = vmax.f32 %v972, %v866
        %v975 = vmax.f32 %v973, %v872
        %v976 = vmax.f32 %v974, %v876
        %v977 = vmax.f32 %v975, %v882
        %v978 = vmax.f32 %v976, %v886
        %v979 = vmax.f32 %v977, %v892
        %v980 = vmax.f32 %v978, %v896
        %v981 = vmax.f32 %v979, %v902
        %v982 = vmax.f32 %v980, %v906
        %v983 = vmax.f32 %v981, %v912
        %v984 = vmax.f32 %v982, %v916
        %v985 = vmax.f32 %v983, %v984
        %v986 = vrot.slane %v985, 4
        %v987 = vmax.f32 %v985, %v986
        %v988 = vrot.slane %v987, 2
        %v989 = vmax.f32 %v987, %v988
        %v990 = vrot.slane %v989, 1
        %v991 = vmax.f32 %v989, %v990
        %v992 = vsub.f32 %v760, %v954
        %v993 = vsub.f32 %v762, %v991
        %v994 = vsub.f32 %v764, %v954
        %v995 = vsub.f32 %v766, %v991
        %v996 = vsub.f32 %v770, %v954
        %v997 = vsub.f32 %v772, %v991
        %v998 = vsub.f32 %v774, %v954
        %v999 = vsub.f32 %v776, %v991
        %v1000 = vsub.f32 %v780, %v954
        %v1001 = vsub.f32 %v782, %v991
        %v1002 = vsub.f32 %v784, %v954
        %v1003 = vsub.f32 %v786, %v991
        %v1004 = vsub.f32 %v790, %v954
        %v1005 = vsub.f32 %v792, %v991
        %v1006 = vsub.f32 %v794, %v954
        %v1007 = vsub.f32 %v796, %v991
        %v1008 = vsub.f32 %v800, %v954
        %v1009 = vsub.f32 %v802, %v991
        %v1010 = vsub.f32 %v804, %v954
        %v1011 = vsub.f32 %v806, %v991
        %v1012 = vsub.f32 %v810, %v954
        %v1013 = vsub.f32 %v812, %v991
        %v1014 = vsub.f32 %v814, %v954
        %v1015 = vsub.f32 %v816, %v991
        %v1016 = vsub.f32 %v820, %v954
        %v1017 = vsub.f32 %v822, %v991
        %v1018 = vsub.f32 %v824, %v954
        %v1019 = vsub.f32 %v826, %v991
        %v1020 = vsub.f32 %v830, %v954
        %v1021 = vsub.f32 %v832, %v991
        %v1022 = vsub.f32 %v834, %v954
        %v1023 = vsub.f32 %v836, %v991
        %v1024 = vsub.f32 %v840, %v954
        %v1025 = vsub.f32 %v842, %v991
        %v1026 = vsub.f32 %v844, %v954
        %v1027 = vsub.f32 %v846, %v991
        %v1028 = vsub.f32 %v850, %v954
        %v1029 = vsub.f32 %v852, %v991
        %v1030 = vsub.f32 %v854, %v954
        %v1031 = vsub.f32 %v856, %v991
        %v1032 = vsub.f32 %v860, %v954
        %v1033 = vsub.f32 %v862, %v991
        %v1034 = vsub.f32 %v864, %v954
        %v1035 = vsub.f32 %v866, %v991
        %v1036 = vsub.f32 %v870, %v954
        %v1037 = vsub.f32 %v872, %v991
        %v1038 = vsub.f32 %v874, %v954
        %v1039 = vsub.f32 %v876, %v991
        %v1040 = vsub.f32 %v880, %v954
        %v1041 = vsub.f32 %v882, %v991
        %v1042 = vsub.f32 %v884, %v954
        %v1043 = vsub.f32 %v886, %v991
        %v1044 = vsub.f32 %v890, %v954
        %v1045 = vsub.f32 %v892, %v991
        %v1046 = vsub.f32 %v894, %v954
        %v1047 = vsub.f32 %v896, %v991
        %v1048 = vsub.f32 %v900, %v954
        %v1049 = vsub.f32 %v902, %v991
        %v1050 = vsub.f32 %v904, %v954
        %v1051 = vsub.f32 %v906, %v991
        %v1052 = vsub.f32 %v910, %v954
        %v1053 = vsub.f32 %v912, %v991
        %v1054 = vsub.f32 %v914, %v954
        %v1055 = vsub.f32 %v916, %v991
        %v1056 = vmul.f32 %v992, 1.442695
        %v1057 = vpow.pop %v1056
        %v1058 = vmul.f32 %v993, 1.442695
        %v1059 = vpow.pop %v1058
        %v1060 = vmul.f32 %v994, 1.442695
        %v1061 = vpow.pop %v1060
        %v1062 = vmul.f32 %v995, 1.442695
        %v1063 = vpow.pop %v1062
        %v1064 = vmul.f32 %v996, 1.442695
        %v1065 = vpow.pop %v1064
        %v1066 = vmul.f32 %v997, 1.442695
        %v1067 = vpow.pop %v1066
        %v1068 = vmul.f32 %v998, 1.442695
        %v1069 = vpow.pop %v1068
        %v1070 = vmul.f32 %v999, 1.442695
        %v1071 = vpow.pop %v1070
        %v1072 = vmul.f32 %v1000, 1.442695
        %v1073 = vpow.pop %v1072
        %v1074 = vmul.f32 %v1001, 1.442695
        %v1075 = vpow.pop %v1074
        %v1076 = vmul.f32 %v1002, 1.442695
        %v1077 = vpow.pop %v1076
        %v1078 = vmul.f32 %v1003, 1.442695
        %v1079 = vpow.pop %v1078
        %v1080 = vmul.f32 %v1004, 1.442695
        %v1081 = vpow.pop %v1080
        %v1082 = vmul.f32 %v1005, 1.442695
        %v1083 = vpow.pop %v1082
        %v1084 = vmul.f32 %v1006, 1.442695
        %v1085 = vpow.pop %v1084
        %v1086 = vmul.f32 %v1007, 1.442695
        %v1087 = vpow.pop %v1086
        %v1088 = vmul.f32 %v1008, 1.442695
        %v1089 = vpow.pop %v1088
        %v1090 = vmul.f32 %v1009, 1.442695
        %v1091 = vpow.pop %v1090
        %v1092 = vmul.f32 %v1010, 1.442695
        %v1093 = vpow.pop %v1092
        %v1094 = vmul.f32 %v1011, 1.442695
        %v1095 = vpow.pop %v1094
        %v1096 = vmul.f32 %v1012, 1.442695
        %v1097 = vpow.pop %v1096
        %v1098 = vmul.f32 %v1013, 1.442695
        %v1099 = vpow.pop %v1098
        %v1100 = vmul.f32 %v1014, 1.442695
        %v1101 = vpow.pop %v1100
        %v1102 = vmul.f32 %v1015, 1.442695
        %v1103 = vpow.pop %v1102
        %v1104 = vmul.f32 %v1016, 1.442695
        %v1105 = vpow.pop %v1104
        %v1106 = vmul.f32 %v1017, 1.442695
        %v1107 = vpow.pop %v1106
        %v1108 = vmul.f32 %v1018, 1.442695
        %v1109 = vpow.pop %v1108
        %v1110 = vmul.f32 %v1019, 1.442695
        %v1111 = vpow.pop %v1110
        %v1112 = vmul.f32 %v1020, 1.442695
        %v1113 = vpow.pop %v1112
        %v1114 = vmul.f32 %v1021, 1.442695
        %v1115 = vpow.pop %v1114
        %v1116 = vmul.f32 %v1022, 1.442695
        %v1117 = vpow.pop %v1116
        %v1118 = vmul.f32 %v1023, 1.442695
        %v1119 = vpow.pop %v1118
        %v1120 = vmul.f32 %v1024, 1.442695
        %v1121 = vpow.pop %v1120
        %v1122 = vmul.f32 %v1025, 1.442695
        %v1123 = vpow.pop %v1122
        %v1124 = vmul.f32 %v1026, 1.442695
        %v1125 = vpow.pop %v1124
        %v1126 = vmul.f32 %v1027, 1.442695
        %v1127 = vpow.pop %v1126
        %v1128 = vmul.f32 %v1028, 1.442695
        %v1129 = vpow.pop %v1128
        %v1130 = vmul.f32 %v1029, 1.442695
        %v1131 = vpow.pop %v1130
        %v1132 = vmul.f32 %v1030, 1.442695
        %v1133 = vpow.pop %v1132
        %v1134 = vmul.f32 %v1031, 1.442695
        %v1135 = vpow.pop %v1134
        %v1136 = vmul.f32 %v1032, 1.442695
        %v1137 = vpow.pop %v1136
        %v1138 = vmul.f32 %v1033, 1.442695
        %v1139 = vpow.pop %v1138
        %v1140 = vmul.f32 %v1034, 1.442695
        %v1141 = vpow.pop %v1140
        %v1142 = vmul.f32 %v1035, 1.442695
        %v1143 = vpow.pop %v1142
        %v1144 = vmul.f32 %v1036, 1.442695
        %v1145 = vpow.pop %v1144
        %v1146 = vmul.f32 %v1037, 1.442695
        %v1147 = vpow.pop %v1146
        %v1148 = vmul.f32 %v1038, 1.442695
        %v1149 = vpow.pop %v1148
        %v1150 = vmul.f32 %v1039, 1.442695
        %v1151 = vpow.pop %v1150
        %v1152 = vmul.f32 %v1040, 1.442695
        %v1153 = vpow.pop %v1152
        %v1154 = vmul.f32 %v1041, 1.442695
        %v1155 = vpow.pop %v1154
        %v1156 = vmul.f32 %v1042, 1.442695
        %v1157 = vpow.pop %v1156
        %v1158 = vmul.f32 %v1043, 1.442695
        %v1159 = vpow.pop %v1158
        %v1160 = vmul.f32 %v1044, 1.442695
        %v1161 = vpow.pop %v1160
        %v1162 = vmul.f32 %v1045, 1.442695
        %v1163 = vpow.pop %v1162
        %v1164 = vmul.f32 %v1046, 1.442695
        %v1165 = vpow.pop %v1164
        %v1166 = vmul.f32 %v1047, 1.442695
        %v1167 = vpow.pop %v1166
        %v1168 = vmul.f32 %v1048, 1.442695
        %v1169 = vpow.pop %v1168
        %v1170 = vmul.f32 %v1049, 1.442695
        %v1171 = vpow.pop %v1170
        %v1172 = vmul.f32 %v1050, 1.442695
        %v1173 = vpow.pop %v1172
        %v1174 = vmul.f32 %v1051, 1.442695
        %v1175 = vpow.pop %v1174
        %v1176 = vmul.f32 %v1052, 1.442695
        %v1177 = vpow.pop %v1176
        %v1178 = vmul.f32 %v1053, 1.442695
        %v1179 = vpow.pop %v1178
        %v1180 = vmul.f32 %v1054, 1.442695
        %v1181 = vpow.pop %v1180
        %v1182 = vmul.f32 %v1055, 1.442695
        %v1183 = vpow.pop %v1182
        %v1184 = vadd.f32 %v1057, %v1061
        %v1185 = vadd.f32 %v1184, %v1065
        %v1186 = vadd.f32 %v1185, %v1069
        %v1187 = vadd.f32 %v1186, %v1073
        %v1188 = vadd.f32 %v1187, %v1077
        %v1189 = vadd.f32 %v1188, %v1081
        %v1190 = vadd.f32 %v1189, %v1085
        %v1191 = vadd.f32 %v1190, %v1089
        %v1192 = vadd.f32 %v1191, %v1093
        %v1193 = vadd.f32 %v1192, %v1097
        %v1194 = vadd.f32 %v1193, %v1101
        %v1195 = vadd.f32 %v1194, %v1105
        %v1196 = vadd.f32 %v1195, %v1109
        %v1197 = vadd.f32 %v1196, %v1113
        %v1198 = vadd.f32 %v1197, %v1117
        %v1199 = vadd.f32 %v1198, %v1121
        %v1200 = vadd.f32 %v1199, %v1125
        %v1201 = vadd.f32 %v1200, %v1129
        %v1202 = vadd.f32 %v1201, %v1133
        %v1203 = vadd.f32 %v1202, %v1137
        %v1204 = vadd.f32 %v1203, %v1141
        %v1205 = vadd.f32 %v1204, %v1145
        %v1206 = vadd.f32 %v1205, %v1149
        %v1207 = vadd.f32 %v1206, %v1153
        %v1208 = vadd.f32 %v1207, %v1157
        %v1209 = vadd.f32 %v1208, %v1161
        %v1210 = vadd.f32 %v1209, %v1165
        %v1211 = vadd.f32 %v1210, %v1169
        %v1212 = vadd.f32 %v1211, %v1173
        %v1213 = vadd.f32 %v1212, %v1177
        %v1214 = vadd.f32 %v1213, %v1181
        %v1215 = vrot.slane %v1214, 4
        %v1216 = vadd.f32 %v1214, %v1215
        %v1217 = vrot.slane %v1216, 2
        %v1218 = vadd.f32 %v1216, %v1217
        %v1219 = vrot.slane %v1218, 1
        %v1220 = vadd.f32 %v1218, %v1219
        %v1221 = vadd.f32 %v1059, %v1063
        %v1222 = vadd.f32 %v1221, %v1067
        %v1223 = vadd.f32 %v1222, %v1071
        %v1224 = vadd.f32 %v1223, %v1075
        %v1225 = vadd.f32 %v1224, %v1079
        %v1226 = vadd.f32 %v1225, %v1083
        %v1227 = vadd.f32 %v1226, %v1087
        %v1228 = vadd.f32 %v1227, %v1091
        %v1229 = vadd.f32 %v1228, %v1095
        %v1230 = vadd.f32 %v1229, %v1099
        %v1231 = vadd.f32 %v1230, %v1103
        %v1232 = vadd.f32 %v1231, %v1107
        %v1233 = vadd.f32 %v1232, %v1111
        %v1234 = vadd.f32 %v1233, %v1115
        %v1235 = vadd.f32 %v1234, %v1119
        %v1236 = vadd.f32 %v1235, %v1123
        %v1237 = vadd.f32 %v1236, %v1127
        %v1238 = vadd.f32 %v1237, %v1131
        %v1239 = vadd.f32 %v1238, %v1135
        %v1240 = vadd.f32 %v1239, %v1139
        %v1241 = vadd.f32 %v1240, %v1143
        %v1242 = vadd.f32 %v1241, %v1147
        %v1243 = vadd.f32 %v1242, %v1151
        %v1244 = vadd.f32 %v1243, %v1155
        %v1245 = vadd.f32 %v1244, %v1159
        %v1246 = vadd.f32 %v1245, %v1163
        %v1247 = vadd.f32 %v1246, %v1167
        %v1248 = vadd.f32 %v1247, %v1171
        %v1249 = vadd.f32 %v1248, %v1175
        %v1250 = vadd.f32 %v1249, %v1179
        %v1251 = vadd.f32 %v1250, %v1183
        %v1252 = vrot.slane %v1251, 4
        %v1253 = vadd.f32 %v1251, %v1252
        %v1254 = vrot.slane %v1253, 2
        %v1255 = vadd.f32 %v1253, %v1254
        %v1256 = vrot.slane %v1255, 1
        %v1257 = vadd.f32 %v1255, %v1256
        %v1258 = vld [vmem:[#allocation3] sm:$0xff]
        %v1259 = vld [vmem:[#allocation3 + $0x8] sm:$0xff]
        %v1260 = vld [vmem:[#allocation3 + $0x10] sm:$0xff]
        %v1261 = vld [vmem:[#allocation3 + $0x18] sm:$0xff]
        %v1262 = vpack.c.bf16 %v1061, %v1057
        %v1263 = vpack.c.bf16 %v1063, %v1059
        %v1264 = vpack.c.bf16 %v1069, %v1065
        %v1265 = vpack.c.bf16 %v1071, %v1067
        %v1266 = vpack.c.bf16 %v1077, %v1073
        %v1267 = vpack.c.bf16 %v1079, %v1075
        %v1268 = vpack.c.bf16 %v1085, %v1081
        %v1269 = vpack.c.bf16 %v1087, %v1083
        %v1270 = vpack.c.bf16 %v1093, %v1089
        %v1271 = vpack.c.bf16 %v1095, %v1091
        %v1272 = vpack.c.bf16 %v1101, %v1097
        %v1273 = vpack.c.bf16 %v1103, %v1099
        %v1274 = vpack.c.bf16 %v1109, %v1105
        %v1275 = vpack.c.bf16 %v1111, %v1107
        %v1276 = vpack.c.bf16 %v1117, %v1113
        %v1277 = vpack.c.bf16 %v1119, %v1115
        %v1278 = vpack.c.bf16 %v1125, %v1121
        %v1279 = vpack.c.bf16 %v1127, %v1123
        %v1280 = vpack.c.bf16 %v1133, %v1129
        %v1281 = vpack.c.bf16 %v1135, %v1131
        %v1282 = vpack.c.bf16 %v1141, %v1137
        %v1283 = vpack.c.bf16 %v1143, %v1139
        %v1284 = vpack.c.bf16 %v1149, %v1145
        %v1285 = vpack.c.bf16 %v1151, %v1147
        %v1286 = vpack.c.bf16 %v1157, %v1153
        %v1287 = vpack.c.bf16 %v1159, %v1155
        %v1288 = vpack.c.bf16 %v1165, %v1161
        %v1289 = vpack.c.bf16 %v1167, %v1163
        %v1290 = vpack.c.bf16 %v1173, %v1169
        %v1291 = vpack.c.bf16 %v1175, %v1171
        %v1292 = vpack.c.bf16 %v1181, %v1177
        %v1293 = vpack.c.bf16 %v1183, %v1179
        %1294 = vmatprep.subr.bf16.mxu0 %v1263
        %1295 = vmatpush1.bf16.msra.mxu0 %v1262
        %1296 = vmatprep.subr.bf16.mxu0 %v1265
        %1297 = vmatpush1.bf16.msra.mxu0 %v1264
        %1298 = vmatprep.subr.bf16.mxu0 %v1267
        %1299 = vmatpush1.bf16.msra.mxu0 %v1266
        %1300 = vmatprep.subr.bf16.mxu0 %v1269
        %1301 = vmatpush1.bf16.msra.mxu0 %v1268
        %1302 = vmatprep.subr.bf16.mxu0 %v1271
        %1303 = vmatpush1.bf16.msra.mxu0 %v1270
        %1304 = vmatprep.subr.bf16.mxu0 %v1273
        %1305 = vmatpush1.bf16.msra.mxu0 %v1272
        %1306 = vmatprep.subr.bf16.mxu0 %v1275
        %1307 = vmatpush1.bf16.msra.mxu0 %v1274
        %1308 = vmatprep.subr.bf16.mxu0 %v1277
        %1309 = vmatpush1.bf16.msra.mxu0 %v1276
        %1310 = vmatprep.subr.bf16.mxu0 %v1279
        %1311 = vmatpush1.bf16.msra.mxu0 %v1278
        %1312 = vmatprep.subr.bf16.mxu0 %v1281
        %1313 = vmatpush1.bf16.msra.mxu0 %v1280
        %1314 = vmatprep.subr.bf16.mxu0 %v1283
        %1315 = vmatpush1.bf16.msra.mxu0 %v1282
        %1316 = vmatprep.subr.bf16.mxu0 %v1285
        %1317 = vmatpush1.bf16.msra.mxu0 %v1284
        %1318 = vmatprep.subr.bf16.mxu0 %v1287
        %1319 = vmatpush1.bf16.msra.mxu0 %v1286
        %1320 = vmatprep.subr.bf16.mxu0 %v1289
        %1321 = vmatpush1.bf16.msra.mxu0 %v1288
        %1322 = vmatprep.subr.bf16.mxu0 %v1291
        %1323 = vmatpush1.bf16.msra.mxu0 %v1290
        %1324 = vmatprep.subr.bf16.mxu0 %v1293
        %1325 = vmatpush1.bf16.msra.mxu0 %v1292
        %1326 = vmatprep.mubr.bf16.mxu0 %v1259
        %1327 = vmatmul.mubr.bf16.gmra.mrb[0].mxu0 %v1258
        %v1328 = vpop.f32.mrb[0].mxu0
        %v1329 = vadd.f32 0.0, %v1328
        %v1330 = vpop.f32.mrb[0].mxu0
        %v1331 = vadd.f32 0.0, %v1330
        %v1332 = vpop.f32.mrb[0].mxu0
        %v1333 = vadd.f32 0.0, %v1332
        %v1334 = vpop.f32.mrb[0].mxu0
        %v1335 = vadd.f32 0.0, %v1334
        %1336 = vmatprep.mubr.bf16.mxu0 %v1261
        %1337 = vmatmul.mubr.bf16.gmra.mrb[0].mxu0 %v1260
        %v1338 = vpop.f32.mrb[0].mxu0
        %v1339 = vadd.f32 0.0, %v1338
        %v1340 = vpop.f32.mrb[0].mxu0
        %v1341 = vadd.f32 0.0, %v1340
        %v1342 = vpop.f32.mrb[0].mxu0
        %v1343 = vadd.f32 0.0, %v1342
        %v1344 = vpop.f32.mrb[0].mxu0
        %v1345 = vadd.f32 0.0, %v1344
        %1346 = vdwg.mxu0
        %v1347 = vrcp.pop %v1220
        %v1348 = vrcp.pop %v1257
        %s1349 = sld [smem:[#allocation4]]
        %v1350 = vmul.f32 %v1329, %v1347
        %v1351 = vmul.f32 %v1331, %v1348
        %v1352 = vmul.f32 %v1333, %v1347
        %v1353 = vmul.f32 %v1335, %v1348
        %v1354 = vmul.f32 %v1339, %v1347
        %v1355 = vmul.f32 %v1341, %v1348
        %v1356 = vmul.f32 %v1343, %v1347
        %v1357 = vmul.f32 %v1345, %v1348
        %v1358 = vstv %s1349
        %v1359 = vmul.f32 %v1358, %v1350
        %v1360 = vmul.f32 %v1358, %v1351
        %v1361 = vmul.f32 %v1358, %v1352
        %v1362 = vmul.f32 %v1358, %v1353
        %v1363 = vmul.f32 %v1358, %v1354
        %v1364 = vmul.f32 %v1358, %v1355
        %v1365 = vmul.f32 %v1358, %v1356
        %v1366 = vmul.f32 %v1358, %v1357
        %v1367 = vld [vmem:[%s302] sm:$0xff]
        %v1368 = vld [vmem:[%s302 + $0x8] sm:$0xff]
        %v1369 = vld [vmem:[%s302 + $0x10] sm:$0xff]
        %v1370 = vld [vmem:[%s302 + $0x18] sm:$0xff]
        %v1371 = vld [vmem:[%s302 + $0x20] sm:$0xff]
        %v1372 = vld [vmem:[%s302 + $0x28] sm:$0xff]
        %v1373 = vld [vmem:[%s302 + $0x30] sm:$0xff]
        %v1374 = vld [vmem:[%s302 + $0x38] sm:$0xff]
        %v1375 = vadd.f32 %v1359, %v1367
        %v1376 = vadd.f32 %v1360, %v1368
        %v1377 = vadd.f32 %v1361, %v1369
        %v1378 = vadd.f32 %v1362, %v1370
        %v1379 = vadd.f32 %v1363, %v1371
        %v1380 = vadd.f32 %v1364, %v1372
        %v1381 = vadd.f32 %v1365, %v1373
        %v1382 = vadd.f32 %v1366, %v1374
        %1383 = vst [vmem:[%s287] sm:$0xff] %v1375
        %1384 = vst [vmem:[%s287 + $0x8] sm:$0xff] %v1376
        %1385 = vst [vmem:[%s287 + $0x10] sm:$0xff] %v1377
        %1386 = vst [vmem:[%s287 + $0x18] sm:$0xff] %v1378
        %1387 = vst [vmem:[%s287 + $0x20] sm:$0xff] %v1379
        %1388 = vst [vmem:[%s287 + $0x28] sm:$0xff] %v1380
        %1389 = vst [vmem:[%s287 + $0x30] sm:$0xff] %v1381
        %1390 = vst [vmem:[%s287 + $0x38] sm:$0xff] %v1382
        %s1391 = sand.u32 %s171, 1
        %s1392 = scalar_lea.sflag [#allocation7], %s1391
        %s1393 = sand.u32 %s171, 1
        %s1394 = smul.addr %s1393, 64
        %s1395 = scalar_lea.vmem [#allocation8], %s1394
        // Predicated region
        $region49: #{tpu_custom_call.1} parent=39 // pred_check
          %p1396 = pneg %p181
        $region50: #{tpu_custom_call.1} parent=39 // pred_check_branch
          %1398 = sbr.rel (%p1396) target = $region52
        $region51: #{tpu_custom_call.1} parent=39 // pred_region
          %s1399 = sadd.s32 %s27, %s28
          %s1400 = smul.u32 2, %s1399
          %s1402 = ssub.s32 1024, 1024
          %1403 = vsyncadd %s1392, %s1402
          %s1404 = smul.addr %s26, 8
          %s1405 = sadd.s32 %s1400, %s1404
          %s1406 = smul.addr %s1405, 128
          %s1407 = scalar_lea.hbm %s5, %s1406
          %s1408 = sshll.u32 %s1395, 4
          %s1409 = int_to_ptr.vmem [resolvable:$true] %s1408
          %1414 = dma.vmem_to_hbm [thread:$0]  %s1409, 1024, %s1407, %s1392, 256, 256, 16
        $region52: #{tpu_custom_call.1} parent=39 // pred_fallthru
          _
      $region40: #{tpu_custom_call.1} parent=5 // pred_fallthru
        _
      %p1415 = scmp.le.s32.totalorder 2, %s16
      // Predicated region
      $region53: #{tpu_custom_call.1} parent=5 // pred_check
        %p1416 = pneg %p1415
      $region54: #{tpu_custom_call.1} parent=5 // pred_check_branch
        %1418 = sbr.rel (%p1416) target = $region56
      $region55: #{tpu_custom_call.1} parent=5 // pred_region
        %s1419 = ssub.s32 %s16, 2
        // Predicated region
        $region57: #{tpu_custom_call.1} parent=55 // pred_check
          %p1420 = pneg %p187
        $region58: #{tpu_custom_call.1} parent=55 // pred_check_branch
          %1422 = sbr.rel (%p1420) target = $region60
        $region59: #{tpu_custom_call.1} parent=55 // pred_region
          %s1423 = sand.u32 %s172, 1
          %s1424 = scalar_lea.sflag [#allocation7], %s1423
          %s1425 = sand.u32 %s172, 1
          %s1426 = smul.addr %s1425, 64
          %s1427 = scalar_lea.vmem [#allocation8], %s1426
          %1428 = dma.done %s1424, 1024
        $region60: #{tpu_custom_call.1} parent=55 // pred_fallthru
          _
      $region56: #{tpu_custom_call.1} parent=5 // pred_fallthru
        _
    $region6: #{tpu_custom_call.1} parent=1 // loop_footer
      %s20 = sadd.s32 1, %s16
    $region7: #{tpu_custom_call.1} parent=1 // loop_footer_branch
      %15 = sbr.rel target = $region3
    $region8: #{tpu_custom_call.1} parent=1 // loop_exit
      _
    %1429 = vsyncpa [#allocation6], 1
    %s1430 = scalar_lea.sflag [#allocation6], 1
    %1431 = vsyncpa %s1430, 1
    %1432 = vsyncpa [#allocation7], 1
    %s1433 = scalar_lea.sflag [#allocation7], 1
    %1434 = vsyncpa %s1433, 1

</llo_original>
